<compile_context>
chip_gen: v6e
topology: v6e:2x2x1
jax: 0.10.0
libtpu: 0.0.40
codegen_flags: <defaults>
</compile_context>

<pallas_src>
import jax
import jax.numpy as jnp
from jax import lax
from jax.experimental import pallas as pl
from jax.experimental.pallas import tpu as pltpu


def _vmem_limit_bytes():
    """Scoped-VMEM limit derived from the actual chip (v5e/v6e: 128 MiB, v7x: 64 MiB)."""
    cap = 128 * 1024 * 1024
    try:
        cap = int(pltpu.get_tpu_info().vmem_capacity_bytes)
    except Exception:
        pass
    return max(32 * 1024 * 1024, min((3 * cap) // 4, 96 * 1024 * 1024))


VMEM_LIMIT = _vmem_limit_bytes()


def _pick_batch_tile(n, per_image_bytes, budget_bytes):
    """Largest divisor of n whose (double-buffered) per-step working set fits the budget."""
    bt = 1
    for cand in range(1, n + 1):
        if n % cand == 0 and cand * per_image_bytes <= budget_bytes:
            bt = cand
    return bt


# --------------------------------------------------------------------------------------
# Kernels
# --------------------------------------------------------------------------------------
def down_kernel(a_ref, w_ref, h_ref):
    """Conv2d(k4,s2,p1,bias=False) over LeakyReLU'd input (pre-built im2col patches),
    fused with the up-path ReLU.  One MXU matmul with K = 16*Cin and Bt*M rows.

    a_ref : (Bt, M, 16*Cin) bf16   im2col patches of the padded LeakyReLU(x)
    w_ref : (16*Cin, Cmid)  bf16   Conv2d weight reshaped to (kh*kw*ci, co)
    h_ref : (Bt, M, Cmid)   bf16   ReLU(conv) output, dense (halo added in wrapper)
    """
    bt, m, k = a_ref.shape
    a = a_ref[...].reshape(bt * m, k)
    acc = jnp.dot(a, w_ref[...], preferred_element_type=jnp.float32)
    h_ref[...] = jnp.maximum(acc, 0.0).reshape(h_ref.shape).astype(h_ref.dtype)


def up_matmul_kernel(p_ref, w_ref, y_ref, s1_ref, s2_ref):
    """ConvTranspose2d(k4,s2,p1,bias=False) for one (output parity, batch chunk) as a
    single K = 4*Cmid matmul; BatchNorm partial sums accumulated across the batch axis.

    p_ref  : (1, 1, Bt, M, 4*Cmid) bf16   per-parity im2col patches of padded ReLU(h)
    w_ref  : (1, 1, 4*Cmid, Cout)  bf16   per-parity ConvT weight (constant over batch)
    y_ref  : (1, 1, Bt, M, Cout)   bf16   raw (pre-BN) output for this parity / chunk
    s1_ref : (1, 1, 1, 1, Cout)    f32    sum(y)    (accumulated over the batch axis)
    s2_ref : (1, 1, 1, 1, Cout)    f32    sum(y*y)  (accumulated over the batch axis)
    """
    _, _, bt, m, k = p_ref.shape
    p = p_ref[...].reshape(bt * m, k)
    acc = jnp.dot(p, w_ref[0, 0, :, :], preferred_element_type=jnp.float32)
    y_ref[...] = acc.reshape(y_ref.shape).astype(y_ref.dtype)

    @pl.when(pl.program_id(2) == 0)
    def _():
        s1_ref[...] = jnp.zeros_like(s1_ref)
        s2_ref[...] = jnp.zeros_like(s2_ref)

    s1_ref[...] += jnp.sum(acc, axis=0, keepdims=True).reshape(s1_ref.shape)
    s2_ref[...] += jnp.sum(acc * acc, axis=0, keepdims=True).reshape(s2_ref.shape)


def cat_norm_kernel(x_ref, y_ref, sc_ref, sh_ref, o_ref):
    """Pass 2: folded BatchNorm affine + skip concat, channel-major / lane-dense layout.

    x_ref : (Bt, Cin,  H*W) f32    skip input (NCHW with spatial flattened -> 128k lanes)
    y_ref : (Bt, Cout, H*W) bf16   pre-BN ConvT output, already de-interleaved
    sc_ref, sh_ref : (Cout, 1) f32 gamma*inv_std  /  beta - mean*gamma*inv_std
    o_ref : (Bt, Cin+Cout, H*W) f32
    """
    cin = x_ref.shape[1]
    o_ref[:, :cin, :] = x_ref[...]
    o_ref[:, cin:, :] = y_ref[...].astype(jnp.float32) * sc_ref[...] + sh_ref[...]


# --------------------------------------------------------------------------------------
# Wrapper
# --------------------------------------------------------------------------------------
def unet_innermost_forward(x_nchw, w_down, w_up, gamma, beta, eps=1e-5):
    """forward() of UnetSkipConnectionBlock(outer_nc, inner_nc, innermost=True).

    x_nchw : (N, Cin, H, W) f32
    w_down : (Cmid, Cin, 4, 4)   Conv2d weight (OIHW)
    w_up   : (Cmid, Cout, 4, 4)  ConvTranspose2d weight (in, out, kh, kw)
    gamma, beta : (Cout,)        BatchNorm2d affine params (train-mode batch stats)
    returns (N, Cin + Cout, H, W) f32
    """
    N, Cin, H, W = x_nchw.shape
    Cmid = w_down.shape[0]
    Cout = w_up.shape[1]
    assert H % 2 == 0 and W % 2 == 0
    H2, W2 = H // 2, W // 2
    M = H2 * W2
    HW = H * W
    Ctot = Cin + Cout
    cdtype = jnp.bfloat16

    # batch-chunk size: largest divisor of N whose double-buffered blocks fit VMEM budget.
    per_img = max(
        2 * (M * 16 * Cin + M * Cmid) * 2,                   # down: bf16 in + bf16 out
        2 * (M * 4 * Cmid + M * Cout) * 2,                   # up:   bf16 in + bf16 out
        2 * (HW * Cin * 4 + HW * Cout * 2 + HW * Ctot * 4),  # cat/norm
    )
    Bt = _pick_batch_tile(N, per_img, VMEM_LIMIT // 2)
    NB = N // Bt

    x = x_nchw.astype(jnp.float32)

    # -------- down path: LeakyReLU (hoisted) + im2col (K = 16*Cin) + one MXU matmul -----
    x_act = jnp.where(x >= 0.0, x, 0.2 * x)                            # LeakyReLU in f32
    x_nhwc = jnp.transpose(x_act, (0, 2, 3, 1)).astype(cdtype)         # (N,H,W,Cin) bf16
    xp = jnp.pad(x_nhwc, ((0, 0), (1, 1), (1, 1), (0, 0)))             # conv zero pad
    taps = [xp[:, kh:kh + H:2, kw:kw + W:2, :] for kh in range(4) for kw in range(4)]
    a_down = jnp.concatenate(taps, axis=-1).reshape(N, M, 16 * Cin)    # (N,M,16*Cin) bf16
    w_d = jnp.transpose(w_down, (2, 3, 1, 0)).reshape(16 * Cin, Cmid).astype(cdtype)

    h = pl.pallas_call(
        down_kernel,
        grid=(NB,),
        in_specs=[
            pl.BlockSpec((Bt, M, 16 * Cin), lambda n: (n, 0, 0)),
            pl.BlockSpec((16 * Cin, Cmid), lambda n: (0, 0)),
        ],
        out_specs=pl.BlockSpec((Bt, M, Cmid), lambda n: (n, 0, 0)),
        out_shape=jax.ShapeDtypeStruct((N, M, Cmid), cdtype),
        compiler_params=pltpu.CompilerParams(
            dimension_semantics=("parallel",),
            vmem_limit_bytes=VMEM_LIMIT),
    )(a_down, w_d)

    # 1-px zero halo for the transposed conv (cheap, fuses into the a_up tap concat).
    h_pad = jnp.pad(h.reshape(N, H2, W2, Cmid), ((0, 0), (1, 1), (1, 1), (0, 0)))

    # -------- up path: per-parity im2col (K = 4*Cmid) + matmul + in-kernel BN partials ---
    par_patches, par_weights = [], []
    for a in (0, 1):
        row_p, row_w = [], []
        for b in (0, 1):
            t_list, w_list = [], []
            for kh in ((1, 3) if a == 0 else (0, 2)):
                oh = (a + 3 - kh) // 2
                for kw in ((1, 3) if b == 0 else (0, 2)):
                    ow = (b + 3 - kw) // 2
                    t_list.append(h_pad[:, oh:oh + H2, ow:ow + W2, :])
                    w_list.append(w_up[:, :, kh, kw])                  # (Cmid, Cout)
            row_p.append(jnp.concatenate(t_list, axis=-1).reshape(N, M, 4 * Cmid))
            row_w.append(jnp.concatenate(w_list, axis=0))              # (4*Cmid, Cout)
        par_patches.append(jnp.stack(row_p, axis=0))
        par_weights.append(jnp.stack(row_w, axis=0))
    a_up = jnp.stack(par_patches, axis=0)                              # (2,2,N,M,4*Cmid)
    w_u = jnp.stack(par_weights, axis=0).astype(cdtype)                # (2,2,4*Cmid,Cout)

    y_par, s1, s2 = pl.pallas_call(
        up_matmul_kernel,
        grid=(2, 2, NB),                   # parity outermost -> weight DMA'd once/parity
        in_specs=[
            pl.BlockSpec((1, 1, Bt, M, 4 * Cmid), lambda a, b, n: (a, b, n, 0, 0)),
            pl.BlockSpec((1, 1, 4 * Cmid, Cout), lambda a, b, n: (a, b, 0, 0)),
        ],
        out_specs=[
            pl.BlockSpec((1, 1, Bt, M, Cout), lambda a, b, n: (a, b, n, 0, 0)),
            pl.BlockSpec((1, 1, 1, 1, Cout), lambda a, b, n: (a, b, 0, 0, 0)),
            pl.BlockSpec((1, 1, 1, 1, Cout), lambda a, b, n: (a, b, 0, 0, 0)),
        ],
        out_shape=[
            jax.ShapeDtypeStruct((2, 2, N, M, Cout), cdtype),
            jax.ShapeDtypeStruct((2, 2, 1, 1, Cout), jnp.float32),
            jax.ShapeDtypeStruct((2, 2, 1, 1, Cout), jnp.float32),
        ],
        compiler_params=pltpu.CompilerParams(
            dimension_semantics=("parallel", "parallel", "arbitrary"),
            vmem_limit_bytes=VMEM_LIMIT),
    )(a_up, w_u)

    # -------- BN statistics (tiny (Cout,) math) + folded scale / shift -------------------
    cnt = float(N * H * W)
    s1 = jnp.sum(s1, axis=(0, 1, 2, 3))
    s2 = jnp.sum(s2, axis=(0, 1, 2, 3))
    mean = s1 / cnt
    # biased variance (PyTorch BN normalization); clamp guards tiny f32 cancellation.
    # TODO(synk): a shifted / Chan-combined variance from the per-parity partials would be
    #             safer when |mean| >> std.
    var = jnp.maximum(s2 / cnt - mean * mean, 0.0)
    inv = lax.rsqrt(var + eps)
    g = gamma.astype(jnp.float32)
    scale = (g * inv).reshape(Cout, 1)
    shift = (beta.astype(jnp.float32) - mean * g * inv).reshape(Cout, 1)

    # de-interleave parities + go channel-major while y is still small (bf16):
    #   y_cm[n, c, (2m+a)*W + 2j+b] = y_par[a, b, n, m*W2+j, c]
    y_cm = (y_par.reshape(2, 2, N, H2, W2, Cout)
            .transpose(2, 5, 3, 0, 4, 1)
            .reshape(N, Cout, HW))

    # -------- pass 2: folded BN affine + skip concat (lane-dense, channel-major) ---------
    out = pl.pallas_call(
        cat_norm_kernel,
        grid=(NB,),
        in_specs=[
            pl.BlockSpec((Bt, Cin, HW), lambda n: (n, 0, 0)),
            pl.BlockSpec((Bt, Cout, HW), lambda n: (n, 0, 0)),
            pl.BlockSpec((Cout, 1), lambda n: (0, 0)),
            pl.BlockSpec((Cout, 1), lambda n: (0, 0)),
        ],
        out_specs=pl.BlockSpec((Bt, Ctot, HW), lambda n: (n, 0, 0)),
        out_shape=jax.ShapeDtypeStruct((N, Ctot, HW), jnp.float32),
        compiler_params=pltpu.CompilerParams(
            dimension_semantics=("parallel",),
            vmem_limit_bytes=VMEM_LIMIT),
    )(x.reshape(N, Cin, HW), y_cm, scale, shift)

    # already NCHW channel-major: this reshape is free (no data movement).
    return out.reshape(N, Ctot, H, W)


# --------------------------------------------------------------------------------------
# Pure-JAX reference (same bf16-operand / f32-accumulation / bf16-y policy as the kernels)
# --------------------------------------------------------------------------------------
def _reference_forward(x, w_down, w_up, gamma, beta, eps=1e-5, cdtype=jnp.bfloat16):
    xr = jnp.where(x >= 0.0, x, 0.2 * x).astype(cdtype)
    h = lax.conv_general_dilated(
        xr, w_down.astype(cdtype), window_strides=(2, 2), padding=((1, 1), (1, 1)),
        dimension_numbers=("NCHW", "OIHW", "NCHW"), preferred_element_type=jnp.float32)
    hr = jnp.maximum(h, 0.0).astype(cdtype)
    w_conv = jnp.flip(w_up, axis=(2, 3)).transpose(1, 0, 2, 3).astype(cdtype)
    y = lax.conv_general_dilated(
        hr, w_conv, window_strides=(1, 1), padding=((2, 2), (2, 2)), lhs_dilation=(2, 2),
        dimension_numbers=("NCHW", "OIHW", "NCHW"), preferred_element_type=jnp.float32)
    mean = jnp.mean(y, axis=(0, 2, 3), keepdims=True)
    var = jnp.mean((y - mean) ** 2, axis=(0, 2, 3), keepdims=True)
    yb = y.astype(cdtype).astype(jnp.float32)        # kernels store pre-BN y in bf16
    yn = (yb - mean) * lax.rsqrt(var + eps) * gamma.reshape(1, -1, 1, 1) \
        + beta.reshape(1, -1, 1, 1)
    return jnp.concatenate([x, yn], axis=1)


if __name__ == "__main__":
    key = jax.random.PRNGKey(0)
    k1, k2, k3, k4, k5 = jax.random.split(key, 5)

    N, outer_nc, inner_nc, H, W = 2, 4, 8, 16, 16
    input_nc = outer_nc                                    # input_nc=None -> outer_nc

    x = jax.random.normal(k1, (N, input_nc, H, W), jnp.float32)
    w_down = 0.1 * jax.random.normal(k2, (inner_nc, input_nc, 4, 4), jnp.float32)
    w_up = 0.1 * jax.random.normal(k3, (inner_nc, outer_nc, 4, 4), jnp.float32)
    gamma = 1.0 + 0.1 * jax.random.normal(k4, (outer_nc,), jnp.float32)
    beta = 0.1 * jax.random.normal(k5, (outer_nc,), jnp.float32)

    out = jax.jit(unet_innermost_forward)(x, w_down, w_up, gamma, beta)
    out = jax.block_until_ready(out)

    assert out.shape == (N, input_nc + outer_nc, H, W), out.shape
    ref = _reference_forward(x, w_down, w_up, gamma, beta)
    err = float(jnp.max(jnp.abs(out - ref)))
    assert err < 5e-3, f"max abs error {err}"

    print("KERNEL_OK")
</pallas_src>

<mosaic_0001>
module attributes {stable_mosaic.version = 11 : i64} {
  func.func @down_kernel(%arg0: i32, %arg1: memref<2x64x64xbf16, #tpu.memory_space<vmem>>, %arg2: memref<64x8xbf16, #tpu.memory_space<vmem>>, %arg3: memref<2x64x8xbf16, #tpu.memory_space<vmem>>) attributes {dimension_semantics = [#tpu.dimension_semantics<parallel>], iteration_bounds = array<i64: 1>, scalar_prefetch = 0 : i64, scratch_operands = 0 : i64, tpu.core_type = #tpu.core_type<tc>, window_params = [{transform_indices = @transform_0, window_bounds = array<i64: 2, 64, 64>}, {pipeline_mode = #tpu.pipeline_mode<synchronous>, transform_indices = @transform_1, window_bounds = array<i64: 64, 8>}, {transform_indices = @transform_2, window_bounds = array<i64: 2, 64, 8>}]} {
    %c0 = arith.constant 0 : index
    %c0_0 = arith.constant 0 : index
    %c0_1 = arith.constant 0 : index
    %0 = vector.load %arg1[%c0, %c0_0, %c0_1] : memref<2x64x64xbf16, #tpu.memory_space<vmem>>, vector<2x64x64xbf16>
    %1 = vector.shape_cast %0 : vector<2x64x64xbf16> to vector<128x64xbf16>
    %c0_2 = arith.constant 0 : index
    %c0_3 = arith.constant 0 : index
    %2 = vector.load %arg2[%c0_2, %c0_3] : memref<64x8xbf16, #tpu.memory_space<vmem>>, vector<64x8xbf16>
    %cst = arith.constant dense<0.000000e+00> : vector<128x8xf32>
    %3 = tpu.matmul %1, %2, %cst {dimension_numbers = #tpu.dot_dimension_numbers<[1], [0], [0], [1], [0, 0, 1, 1], [], []>} : vector<128x64xbf16>, vector<64x8xbf16>, vector<128x8xf32> -> vector<128x8xf32>
    %cst_4 = arith.constant 0.000000e+00 : f32
    %4 = vector.broadcast %cst_4 : f32 to vector<128x8xf32>
    %5 = arith.maximumf %3, %4 : vector<128x8xf32>
    %6 = vector.shape_cast %5 : vector<128x8xf32> to vector<2x64x8xf32>
    %7 = arith.truncf %6 : vector<2x64x8xf32> to vector<2x64x8xbf16>
    %c0_5 = arith.constant 0 : index
    %c0_6 = arith.constant 0 : index
    %c0_7 = arith.constant 0 : index
    %8 = vector.load %arg3[%c0_5, %c0_6, %c0_7] : memref<2x64x8xbf16, #tpu.memory_space<vmem>>, vector<2x64x8xbf16>
    tpu.vector_store %arg3[%c0_5, %c0_6, %c0_7], %7 {strides = array<i32>} : memref<2x64x8xbf16, #tpu.memory_space<vmem>>, vector<2x64x8xbf16>,
    return
  }
  func.func @transform_0(%arg0: i32) -> (i32, i32, i32) {
    %c0_i32 = arith.constant 0 : i32
    %c0_i32_0 = arith.constant 0 : i32
    %c0_i32_1 = arith.constant 0 : i32
    return %arg0, %c0_i32, %c0_i32_0 : i32, i32, i32
  }
  func.func @transform_1(%arg0: i32) -> (i32, i32) {
    %c0_i32 = arith.constant 0 : i32
    %c0_i32_0 = arith.constant 0 : i32
    %c0_i32_1 = arith.constant 0 : i32
    return %c0_i32, %c0_i32_0 : i32, i32
  }
  func.func @transform_2(%arg0: i32) -> (i32, i32, i32) {
    %c0_i32 = arith.constant 0 : i32
    %c0_i32_0 = arith.constant 0 : i32
    %c0_i32_1 = arith.constant 0 : i32
    return %arg0, %c0_i32, %c0_i32_0 : i32, i32, i32
  }
}

module attributes {stable_mosaic.version = 11 : i64} {
  func.func @up_matmul_kernel(%arg0: i32, %arg1: i32, %arg2: i32, %arg3: memref<1x1x2x64x32xbf16, #tpu.memory_space<vmem>>, %arg4: memref<1x1x32x4xbf16, #tpu.memory_space<vmem>>, %arg5: memref<1x1x2x64x4xbf16, #tpu.memory_space<vmem>>, %arg6: memref<1x1x1x1x4xf32, #tpu.memory_space<vmem>>, %arg7: memref<1x1x1x1x4xf32, #tpu.memory_space<vmem>>) attributes {dimension_semantics = [#tpu.dimension_semantics<parallel>, #tpu.dimension_semantics<parallel>, #tpu.dimension_semantics<arbitrary>], iteration_bounds = array<i64: 2, 2, 1>, scalar_prefetch = 0 : i64, scratch_operands = 0 : i64, tpu.core_type = #tpu.core_type<tc>, window_params = [{transform_indices = @transform_0, window_bounds = array<i64: 1, 1, 2, 64, 32>}, {transform_indices = @transform_1, window_bounds = array<i64: 1, 1, 32, 4>}, {transform_indices = @transform_2, window_bounds = array<i64: 1, 1, 2, 64, 4>}, {transform_indices = @transform_3, window_bounds = array<i64: 1, 1, 1, 1, 4>}, {transform_indices = @transform_4, window_bounds = array<i64: 1, 1, 1, 1, 4>}]} {
    %c0 = arith.constant 0 : index
    %c0_0 = arith.constant 0 : index
    %c0_1 = arith.constant 0 : index
    %c0_2 = arith.constant 0 : index
    %c0_3 = arith.constant 0 : index
    %0 = vector.load %arg3[%c0, %c0_0, %c0_1, %c0_2, %c0_3] : memref<1x1x2x64x32xbf16, #tpu.memory_space<vmem>>, vector<1x1x2x64x32xbf16>
    %1 = vector.shape_cast %0 : vector<1x1x2x64x32xbf16> to vector<128x32xbf16>
    %c0_4 = arith.constant 0 : index
    %c0_5 = arith.constant 0 : index
    %c0_6 = arith.constant 0 : index
    %c0_7 = arith.constant 0 : index
    %2 = vector.load %arg4[%c0_4, %c0_5, %c0_6, %c0_7] : memref<1x1x32x4xbf16, #tpu.memory_space<vmem>>, vector<1x1x32x4xbf16>
    %3 = vector.shape_cast %2 : vector<1x1x32x4xbf16> to vector<32x4xbf16>
    %cst = arith.constant dense<0.000000e+00> : vector<128x4xf32>
    %4 = tpu.matmul %1, %3, %cst {dimension_numbers = #tpu.dot_dimension_numbers<[1], [0], [0], [1], [0, 0, 1, 1], [], []>} : vector<128x32xbf16>, vector<32x4xbf16>, vector<128x4xf32> -> vector<128x4xf32>
    %5 = vector.shape_cast %4 : vector<128x4xf32> to vector<1x1x2x64x4xf32>
    %6 = arith.truncf %5 : vector<1x1x2x64x4xf32> to vector<1x1x2x64x4xbf16>
    %c0_8 = arith.constant 0 : index
    %c0_9 = arith.constant 0 : index
    %c0_10 = arith.constant 0 : index
    %c0_11 = arith.constant 0 : index
    %c0_12 = arith.constant 0 : index
    %7 = vector.load %arg5[%c0_8, %c0_9, %c0_10, %c0_11, %c0_12] : memref<1x1x2x64x4xbf16, #tpu.memory_space<vmem>>, vector<1x1x2x64x4xbf16>
    tpu.vector_store %arg5[%c0_8, %c0_9, %c0_10, %c0_11, %c0_12], %6 {strides = array<i32>} : memref<1x1x2x64x4xbf16, #tpu.memory_space<vmem>>, vector<1x1x2x64x4xbf16>,
    %c0_i32 = arith.constant 0 : i32
    %8 = arith.cmpi eq, %arg2, %c0_i32 : i32
    %9 = arith.extui %8 : i1 to i32
    %c0_i32_13 = arith.constant 0 : i32
    %10 = arith.cmpi ne, %9, %c0_i32_13 : i32
    scf.if %10 {
      %cst_36 = arith.constant 0.000000e+00 : f32
      %24 = vector.broadcast %cst_36 : f32 to vector<1x1x1x1x4xf32>
      %c0_37 = arith.constant 0 : index
      %c0_38 = arith.constant 0 : index
      %c0_39 = arith.constant 0 : index
      %c0_40 = arith.constant 0 : index
      %c0_41 = arith.constant 0 : index
      %25 = vector.load %arg6[%c0_37, %c0_38, %c0_39, %c0_40, %c0_41] : memref<1x1x1x1x4xf32, #tpu.memory_space<vmem>>, vector<1x1x1x1x4xf32>
      tpu.vector_store %arg6[%c0_37, %c0_38, %c0_39, %c0_40, %c0_41], %24 {strides = array<i32>} : memref<1x1x1x1x4xf32, #tpu.memory_space<vmem>>, vector<1x1x1x1x4xf32>,
      %cst_42 = arith.constant 0.000000e+00 : f32
      %26 = vector.broadcast %cst_42 : f32 to vector<1x1x1x1x4xf32>
      %c0_43 = arith.constant 0 : index
      %c0_44 = arith.constant 0 : index
      %c0_45 = arith.constant 0 : index
      %c0_46 = arith.constant 0 : index
      %c0_47 = arith.constant 0 : index
      %27 = vector.load %arg7[%c0_43, %c0_44, %c0_45, %c0_46, %c0_47] : memref<1x1x1x1x4xf32, #tpu.memory_space<vmem>>, vector<1x1x1x1x4xf32>
      tpu.vector_store %arg7[%c0_43, %c0_44, %c0_45, %c0_46, %c0_47], %26 {strides = array<i32>} : memref<1x1x1x1x4xf32, #tpu.memory_space<vmem>>, vector<1x1x1x1x4xf32>,
    } else {
    }
    %c0_14 = arith.constant 0 : index
    %c0_15 = arith.constant 0 : index
    %c0_16 = arith.constant 0 : index
    %c0_17 = arith.constant 0 : index
    %c0_18 = arith.constant 0 : index
    %11 = vector.load %arg6[%c0_14, %c0_15, %c0_16, %c0_17, %c0_18] : memref<1x1x1x1x4xf32, #tpu.memory_space<vmem>>, vector<1x1x1x1x4xf32>
    %cst_19 = arith.constant dense<0.000000e+00> : vector<4xf32>
    %12 = vector.multi_reduction <add>, %4, %cst_19 [0] : vector<128x4xf32> to vector<4xf32>
    %13 = vector.shape_cast %12 : vector<4xf32> to vector<1x4xf32>
    %14 = vector.shape_cast %13 : vector<1x4xf32> to vector<1x1x1x1x4xf32>
    %15 = arith.addf %11, %14 : vector<1x1x1x1x4xf32>
    %c0_20 = arith.constant 0 : index
    %c0_21 = arith.constant 0 : index
    %c0_22 = arith.constant 0 : index
    %c0_23 = arith.constant 0 : index
    %c0_24 = arith.constant 0 : index
    %16 = vector.load %arg6[%c0_20, %c0_21, %c0_22, %c0_23, %c0_24] : memref<1x1x1x1x4xf32, #tpu.memory_space<vmem>>, vector<1x1x1x1x4xf32>
    tpu.vector_store %arg6[%c0_20, %c0_21, %c0_22, %c0_23, %c0_24], %15 {strides = array<i32>} : memref<1x1x1x1x4xf32, #tpu.memory_space<vmem>>, vector<1x1x1x1x4xf32>,
    %c0_25 = arith.constant 0 : index
    %c0_26 = arith.constant 0 : index
    %c0_27 = arith.constant 0 : index
    %c0_28 = arith.constant 0 : index
    %c0_29 = arith.constant 0 : index
    %17 = vector.load %arg7[%c0_25, %c0_26, %c0_27, %c0_28, %c0_29] : memref<1x1x1x1x4xf32, #tpu.memory_space<vmem>>, vector<1x1x1x1x4xf32>
    %18 = arith.mulf %4, %4 : vector<128x4xf32>
    %cst_30 = arith.constant dense<0.000000e+00> : vector<4xf32>
    %19 = vector.multi_reduction <add>, %18, %cst_30 [0] : vector<128x4xf32> to vector<4xf32>
    %20 = vector.shape_cast %19 : vector<4xf32> to vector<1x4xf32>
    %21 = vector.shape_cast %20 : vector<1x4xf32> to vector<1x1x1x1x4xf32>
    %22 = arith.addf %17, %21 : vector<1x1x1x1x4xf32>
    %c0_31 = arith.constant 0 : index
    %c0_32 = arith.constant 0 : index
    %c0_33 = arith.constant 0 : index
    %c0_34 = arith.constant 0 : index
    %c0_35 = arith.constant 0 : index
    %23 = vector.load %arg7[%c0_31, %c0_32, %c0_33, %c0_34, %c0_35] : memref<1x1x1x1x4xf32, #tpu.memory_space<vmem>>, vector<1x1x1x1x4xf32>
    tpu.vector_store %arg7[%c0_31, %c0_32, %c0_33, %c0_34, %c0_35], %22 {strides = array<i32>} : memref<1x1x1x1x4xf32, #tpu.memory_space<vmem>>, vector<1x1x1x1x4xf32>,
    return
  }
  func.func @transform_0(%arg0: i32, %arg1: i32, %arg2: i32) -> (i32, i32, i32, i32, i32) {
    %c0_i32 = arith.constant 0 : i32
    %c0_i32_0 = arith.constant 0 : i32
    %c0_i32_1 = arith.constant 0 : i32
    return %arg0, %arg1, %arg2, %c0_i32, %c0_i32_0 : i32, i32, i32, i32, i32
  }
  func.func @transform_1(%arg0: i32, %arg1: i32, %arg2: i32) -> (i32, i32, i32, i32) {
    %c0_i32 = arith.constant 0 : i32
    %c0_i32_0 = arith.constant 0 : i32
    %c0_i32_1 = arith.constant 0 : i32
    return %arg0, %arg1, %c0_i32, %c0_i32_0 : i32, i32, i32, i32
  }
  func.func @transform_2(%arg0: i32, %arg1: i32, %arg2: i32) -> (i32, i32, i32, i32, i32) {
    %c0_i32 = arith.constant 0 : i32
    %c0_i32_0 = arith.constant 0 : i32
    %c0_i32_1 = arith.constant 0 : i32
    return %arg0, %arg1, %arg2, %c0_i32, %c0_i32_0 : i32, i32, i32, i32, i32
  }
  func.func @transform_3(%arg0: i32, %arg1: i32, %arg2: i32) -> (i32, i32, i32, i32, i32) {
    %c0_i32 = arith.constant 0 : i32
    %c0_i32_0 = arith.constant 0 : i32
    %c0_i32_1 = arith.constant 0 : i32
    %c0_i32_2 = arith.constant 0 : i32
    return %arg0, %arg1, %c0_i32, %c0_i32_0, %c0_i32_1 : i32, i32, i32, i32, i32
  }
  func.func @transform_4(%arg0: i32, %arg1: i32, %arg2: i32) -> (i32, i32, i32, i32, i32) {
    %c0_i32 = arith.constant 0 : i32
    %c0_i32_0 = arith.constant 0 : i32
    %c0_i32_1 = arith.constant 0 : i32
    %c0_i32_2 = arith.constant 0 : i32
    return %arg0, %arg1, %c0_i32, %c0_i32_0, %c0_i32_1 : i32, i32, i32, i32, i32
  }
}

module attributes {stable_mosaic.version = 11 : i64} {
  func.func @cat_norm_kernel(%arg0: i32, %arg1: memref<2x4x256xf32, #tpu.memory_space<vmem>>, %arg2: memref<2x4x256xbf16, #tpu.memory_space<vmem>>, %arg3: memref<4x1xf32, #tpu.memory_space<vmem>>, %arg4: memref<4x1xf32, #tpu.memory_space<vmem>>, %arg5: memref<2x8x256xf32, #tpu.memory_space<vmem>>) attributes {dimension_semantics = [#tpu.dimension_semantics<parallel>], iteration_bounds = array<i64: 1>, scalar_prefetch = 0 : i64, scratch_operands = 0 : i64, tpu.core_type = #tpu.core_type<tc>, window_params = [{transform_indices = @transform_0, window_bounds = array<i64: 2, 4, 256>}, {transform_indices = @transform_1, window_bounds = array<i64: 2, 4, 256>}, {pipeline_mode = #tpu.pipeline_mode<synchronous>, transform_indices = @transform_2, window_bounds = array<i64: 4, 1>}, {pipeline_mode = #tpu.pipeline_mode<synchronous>, transform_indices = @transform_3, window_bounds = array<i64: 4, 1>}, {transform_indices = @transform_4, window_bounds = array<i64: 2, 8, 256>}]} {
    %c0 = arith.constant 0 : index
    %c0_0 = arith.constant 0 : index
    %c0_1 = arith.constant 0 : index
    %0 = vector.load %arg1[%c0, %c0_0, %c0_1] : memref<2x4x256xf32, #tpu.memory_space<vmem>>, vector<2x4x256xf32>
    %c0_2 = arith.constant 0 : index
    %c0_3 = arith.constant 0 : index
    %c0_4 = arith.constant 0 : index
    %1 = vector.load %arg5[%c0_2, %c0_3, %c0_4] : memref<2x8x256xf32, #tpu.memory_space<vmem>>, vector<2x4x256xf32>
    tpu.vector_store %arg5[%c0_2, %c0_3, %c0_4], %0 {strides = array<i32>} : memref<2x8x256xf32, #tpu.memory_space<vmem>>, vector<2x4x256xf32>,
    %c0_5 = arith.constant 0 : index
    %c0_6 = arith.constant 0 : index
    %c0_7 = arith.constant 0 : index
    %2 = vector.load %arg2[%c0_5, %c0_6, %c0_7] : memref<2x4x256xbf16, #tpu.memory_space<vmem>>, vector<2x4x256xbf16>
    %3 = arith.extf %2 : vector<2x4x256xbf16> to vector<2x4x256xf32>
    %c0_8 = arith.constant 0 : index
    %c0_9 = arith.constant 0 : index
    %4 = vector.load %arg3[%c0_8, %c0_9] : memref<4x1xf32, #tpu.memory_space<vmem>>, vector<4x1xf32>
    %5 = vector.shape_cast %4 : vector<4x1xf32> to vector<1x4x1xf32>
    %6 = vector.broadcast %5 : vector<1x4x1xf32> to vector<2x4x256xf32>
    %7 = arith.mulf %3, %6 : vector<2x4x256xf32>
    %c0_10 = arith.constant 0 : index
    %c0_11 = arith.constant 0 : index
    %8 = vector.load %arg4[%c0_10, %c0_11] : memref<4x1xf32, #tpu.memory_space<vmem>>, vector<4x1xf32>
    %9 = vector.shape_cast %8 : vector<4x1xf32> to vector<1x4x1xf32>
    %10 = vector.broadcast %9 : vector<1x4x1xf32> to vector<2x4x256xf32>
    %11 = arith.addf %7, %10 : vector<2x4x256xf32>
    %c0_12 = arith.constant 0 : index
    %c4 = arith.constant 4 : index
    %c0_13 = arith.constant 0 : index
    %12 = vector.load %arg5[%c0_12, %c4, %c0_13] : memref<2x8x256xf32, #tpu.memory_space<vmem>>, vector<2x4x256xf32>
    tpu.vector_store %arg5[%c0_12, %c4, %c0_13], %11 {strides = array<i32>} : memref<2x8x256xf32, #tpu.memory_space<vmem>>, vector<2x4x256xf32>,
    return
  }
  func.func @transform_0(%arg0: i32) -> (i32, i32, i32) {
    %c0_i32 = arith.constant 0 : i32
    %c0_i32_0 = arith.constant 0 : i32
    %c0_i32_1 = arith.constant 0 : i32
    return %arg0, %c0_i32, %c0_i32_0 : i32, i32, i32
  }
  func.func @transform_1(%arg0: i32) -> (i32, i32, i32) {
    %c0_i32 = arith.constant 0 : i32
    %c0_i32_0 = arith.constant 0 : i32
    %c0_i32_1 = arith.constant 0 : i32
    return %arg0, %c0_i32, %c0_i32_0 : i32, i32, i32
  }
  func.func @transform_2(%arg0: i32) -> (i32, i32) {
    %c0_i32 = arith.constant 0 : i32
    %c0_i32_0 = arith.constant 0 : i32
    %c0_i32_1 = arith.constant 0 : i32
    return %c0_i32, %c0_i32_0 : i32, i32
  }
  func.func @transform_3(%arg0: i32) -> (i32, i32) {
    %c0_i32 = arith.constant 0 : i32
    %c0_i32_0 = arith.constant 0 : i32
    %c0_i32_1 = arith.constant 0 : i32
    return %c0_i32, %c0_i32_0 : i32, i32
  }
  func.func @transform_4(%arg0: i32) -> (i32, i32, i32) {
    %c0_i32 = arith.constant 0 : i32
    %c0_i32_0 = arith.constant 0 : i32
    %c0_i32_1 = arith.constant 0 : i32
    return %arg0, %c0_i32, %c0_i32_0 : i32, i32, i32
  }
}

</mosaic_0001>

<llo_original>
// kernel: unet_innermost_forward.3
$region0: #{unet_innermost_forward.3}
  #allocation0 [shape = 'u32[]', space=smem, size = 0x4, offset = 0x4, fixed_abs, tag = 'smem constant byte address 0x4 - core index']
  #allocation1 [shape = 'u32[144,128]{1,0:T(1,128)}', space=vmem, size = 0x12000, scoped, tag = 'internal scratch']
  %s0 = inlined_call_operand.vmem [shape: bf16[2,64,64], index: 0, kind: input, shape index: {}]
  %s1 = inlined_call_operand.vmem [shape: bf16[64,8], index: 1, kind: input, shape index: {}]
  %s2 = inlined_call_operand.vmem [shape: bf16[2,64,8], index: 2, kind: output, shape index: {}]
  %s3 = sld [smem:[#allocation0]]
  $region18: #{unet_innermost_forward.3} parent=0
    _
  %s5 = ssub.s32 1, %s3
  %s6 = scalar_select 0, %s5, %s3
  // Predicated region
  $region2: #{unet_innermost_forward.3} parent=0 // pred_check
    _
  $region3: #{unet_innermost_forward.3} parent=0 // pred_check_branch
    %8 = sbr.rel (0) target = $region5
  $region4: #{unet_innermost_forward.3} parent=0 // pred_region
    _
  $region5: #{unet_innermost_forward.3} parent=0 // pred_fallthru
    _
  // Predicated region
  $region6: #{unet_innermost_forward.3} parent=0 // pred_check
    _
  $region7: #{unet_innermost_forward.3} parent=0 // pred_check_branch
    %10 = sbr.rel (0) target = $region9
  $region8: #{unet_innermost_forward.3} parent=0 // pred_region
    _
  $region9: #{unet_innermost_forward.3} parent=0 // pred_fallthru
    _
  %v12 = vld [vmem:[%s0] sm:$0xf]
  %v13 = vld [vmem:[%s0 + $0x4] sm:$0xf]
  %v14 = vld [vmem:[%s0 + $0x8] sm:$0xf]
  %v15 = vld [vmem:[%s0 + $0xc] sm:$0xf]
  %v16 = vld [vmem:[%s0 + $0x10] sm:$0xf]
  %v17 = vld [vmem:[%s0 + $0x14] sm:$0xf]
  %v18 = vld [vmem:[%s0 + $0x18] sm:$0xf]
  %v19 = vld [vmem:[%s0 + $0x1c] sm:$0xf]
  %v20 = vld [vmem:[%s0 + $0x20] sm:$0xf]
  %v21 = vld [vmem:[%s0 + $0x24] sm:$0xf]
  %v22 = vld [vmem:[%s0 + $0x28] sm:$0xf]
  %v23 = vld [vmem:[%s0 + $0x2c] sm:$0xf]
  %v24 = vld [vmem:[%s0 + $0x30] sm:$0xf]
  %v25 = vld [vmem:[%s0 + $0x34] sm:$0xf]
  %v26 = vld [vmem:[%s0 + $0x38] sm:$0xf]
  %v27 = vld [vmem:[%s0 + $0x3c] sm:$0xf]
  %v28 = vld [vmem:[%s1] sm:$0xf]
  %v29 = vld [vmem:[%s1 + $0x4] sm:$0xf]
  %v30 = vld [vmem:[%s1 + $0x8] sm:$0xf]
  %v31 = vld [vmem:[%s1 + $0xc] sm:$0xf]
  %v32 = vld [vmem:[%s1 + $0x10] sm:$0xf]
  %v33 = vld [vmem:[%s1 + $0x14] sm:$0xf]
  %v34 = vld [vmem:[%s1 + $0x18] sm:$0xf]
  %v35 = vld [vmem:[%s1 + $0x1c] sm:$0xf]
  %v52 = vunpack.c.l.b16 %v12
  %v53 = vunpack.c.l.b16 %v13
  %v54 = vunpack.c.l.b16 %v14
  %v55 = vunpack.c.l.b16 %v15
  %v56 = vunpack.c.l.b16 %v16
  %v57 = vunpack.c.l.b16 %v17
  %v58 = vunpack.c.l.b16 %v18
  %v59 = vunpack.c.l.b16 %v19
  %v60 = vunpack.c.l.b16 %v20
  %v61 = vunpack.c.l.b16 %v21
  %v62 = vunpack.c.l.b16 %v22
  %v63 = vunpack.c.l.b16 %v23
  %v64 = vunpack.c.l.b16 %v24
  %v65 = vunpack.c.l.b16 %v25
  %v66 = vunpack.c.l.b16 %v26
  %v67 = vunpack.c.l.b16 %v27
  %v68 = vpack.c.b16 %v53, %v52
  %v69 = vpack.c.b16 %v55, %v54
  %v70 = vpack.c.b16 %v57, %v56
  %v71 = vpack.c.b16 %v59, %v58
  %v72 = vpack.c.b16 %v61, %v60
  %v73 = vpack.c.b16 %v63, %v62
  %v74 = vpack.c.b16 %v65, %v64
  %v75 = vpack.c.b16 %v67, %v66
  %v84 = vunpack.c.l.b16 %v28
  %v85 = vunpack.c.l.b16 %v29
  %v86 = vunpack.c.l.b16 %v30
  %v87 = vunpack.c.l.b16 %v31
  %v88 = vunpack.c.l.b16 %v32
  %v89 = vunpack.c.l.b16 %v33
  %v90 = vunpack.c.l.b16 %v34
  %v91 = vunpack.c.l.b16 %v35
  %v92 = vpack.c.b16 %v85, %v84
  %v93 = vpack.c.b16 %v87, %v86
  %v94 = vpack.c.b16 %v89, %v88
  %v95 = vpack.c.b16 %v91, %v90
  %vm100 = vcmask 523264
  %v102 = vsel %vm100, %v68, 0
  %v105 = vsel %vm100, %v69, 0
  %v108 = vsel %vm100, %v70, 0
  %v111 = vsel %vm100, %v71, 0
  %v114 = vsel %vm100, %v72, 0
  %v117 = vsel %vm100, %v73, 0
  %v120 = vsel %vm100, %v74, 0
  %v123 = vsel %vm100, %v75, 0
  %125 = vmatprep.subr.bf16.mxu0 0
  %126 = vmatpush1.bf16.msra.mxu0 0
  %127 = vmatprep.subr.bf16.mxu0 0
  %128 = vmatpush1.bf16.msra.mxu0 0
  %129 = vmatprep.subr.bf16.mxu0 0
  %130 = vmatpush1.bf16.msra.mxu0 0
  %131 = vmatprep.subr.bf16.mxu0 0
  %132 = vmatpush1.bf16.msra.mxu0 0
  %133 = vmatprep.subr.bf16.mxu0 0
  %134 = vmatpush1.bf16.msra.mxu0 %v95
  %135 = vmatprep.subr.bf16.mxu0 0
  %136 = vmatpush1.bf16.msra.mxu0 %v94
  %137 = vmatprep.subr.bf16.mxu0 0
  %138 = vmatpush1.bf16.msra.mxu0 %v93
  %139 = vmatprep.subr.bf16.mxu0 0
  %140 = vmatpush1.bf16.msra.mxu0 %v92
  %141 = vmatprep.subr.bf16.mxu0 0
  %142 = vmatpush2.bf16.msra.mxu0 0
  %143 = vmatprep.subr.bf16.mxu0 0
  %144 = vmatpush2.bf16.msra.mxu0 0
  %145 = vmatprep.subr.bf16.mxu0 0
  %146 = vmatpush2.bf16.msra.mxu0 0
  %147 = vmatprep.subr.bf16.mxu0 0
  %148 = vmatpush2.bf16.msra.mxu0 0
  %149 = vmatprep.subr.bf16.mxu0 0
  %150 = vmatpush2.bf16.msra.mxu0 0
  %151 = vmatprep.subr.bf16.mxu0 0
  %152 = vmatpush2.bf16.msra.mxu0 0
  %153 = vmatprep.subr.bf16.mxu0 0
  %154 = vmatpush2.bf16.msra.mxu0 0
  %155 = vmatprep.subr.bf16.mxu0 0
  %156 = vmatpush2.bf16.msra.mxu0 0
  %157 = vmatprep.mubr.bf16.mxu0 0
  %158 = vmatmul.mubr.bf16.gmra.mxu0 %v102
  %v159 = vpop.f32.mrf.mxu0
  %v160 = vadd.f32 0.0, %v159
  %v161 = vpop.f32.mrf.mxu0
  %v162 = vpop.f32.mrf.mxu0
  %v163 = vadd.f32 0.0, %v162
  %v164 = vpop.f32.mrf.mxu0
  %165 = vmatprep.mubr.bf16.mxu0 0
  %166 = vmatmul.mubr.bf16.gmra.mxu0 %v105
  %v167 = vpop.f32.mrf.mxu0
  %v168 = vadd.f32 0.0, %v167
  %v169 = vpop.f32.mrf.mxu0
  %v170 = vpop.f32.mrf.mxu0
  %v171 = vadd.f32 0.0, %v170
  %v172 = vpop.f32.mrf.mxu0
  %173 = vmatprep.mubr.bf16.mxu0 0
  %174 = vmatmul.mubr.bf16.gmra.mxu0 %v108
  %v175 = vpop.f32.mrf.mxu0
  %v176 = vadd.f32 0.0, %v175
  %v177 = vpop.f32.mrf.mxu0
  %v178 = vpop.f32.mrf.mxu0
  %v179 = vadd.f32 0.0, %v178
  %v180 = vpop.f32.mrf.mxu0
  %181 = vmatprep.mubr.bf16.mxu0 0
  %182 = vmatmul.mubr.bf16.gmra.mxu0 %v111
  %v183 = vpop.f32.mrf.mxu0
  %v184 = vadd.f32 0.0, %v183
  %v185 = vpop.f32.mrf.mxu0
  %v186 = vpop.f32.mrf.mxu0
  %v187 = vadd.f32 0.0, %v186
  %v188 = vpop.f32.mrf.mxu0
  %189 = vmatprep.mubr.bf16.mxu0 0
  %190 = vmatmul.mubr.bf16.gmra.mxu0 %v114
  %v191 = vpop.f32.mrf.mxu0
  %v192 = vadd.f32 0.0, %v191
  %v193 = vpop.f32.mrf.mxu0
  %v194 = vpop.f32.mrf.mxu0
  %v195 = vadd.f32 0.0, %v194
  %v196 = vpop.f32.mrf.mxu0
  %197 = vmatprep.mubr.bf16.mxu0 0
  %198 = vmatmul.mubr.bf16.gmra.mxu0 %v117
  %v199 = vpop.f32.mrf.mxu0
  %v200 = vadd.f32 0.0, %v199
  %v201 = vpop.f32.mrf.mxu0
  %v202 = vpop.f32.mrf.mxu0
  %v203 = vadd.f32 0.0, %v202
  %v204 = vpop.f32.mrf.mxu0
  %205 = vmatprep.mubr.bf16.mxu0 0
  %206 = vmatmul.mubr.bf16.gmra.mxu0 %v120
  %v207 = vpop.f32.mrf.mxu0
  %v208 = vadd.f32 0.0, %v207
  %v209 = vpop.f32.mrf.mxu0
  %v210 = vpop.f32.mrf.mxu0
  %v211 = vadd.f32 0.0, %v210
  %v212 = vpop.f32.mrf.mxu0
  %213 = vmatprep.mubr.bf16.mxu0 0
  %214 = vmatmul.mubr.bf16.gmra.mxu0 %v123
  %v215 = vpop.f32.mrf.mxu0
  %v216 = vadd.f32 0.0, %v215
  %v217 = vpop.f32.mrf.mxu0
  %v218 = vpop.f32.mrf.mxu0
  %v219 = vadd.f32 0.0, %v218
  %v220 = vpop.f32.mrf.mxu0
  %221 = vdwg.mxu0
  %v222 = vmax.f32 %v160, 0.0
  %v223 = vmax.f32 %v163, 0.0
  %v224 = vmax.f32 %v168, 0.0
  %v225 = vmax.f32 %v171, 0.0
  %v226 = vmax.f32 %v176, 0.0
  %v227 = vmax.f32 %v179, 0.0
  %v228 = vmax.f32 %v184, 0.0
  %v229 = vmax.f32 %v187, 0.0
  %v230 = vmax.f32 %v192, 0.0
  %v231 = vmax.f32 %v195, 0.0
  %v232 = vmax.f32 %v200, 0.0
  %v233 = vmax.f32 %v203, 0.0
  %v234 = vmax.f32 %v208, 0.0
  %v235 = vmax.f32 %v211, 0.0
  %v236 = vmax.f32 %v216, 0.0
  %v237 = vmax.f32 %v219, 0.0
  %v238 = vpack.c.bf16 %v223, %v222
  %v239 = vpack.c.bf16 %v225, %v224
  %v240 = vpack.c.bf16 %v227, %v226
  %v241 = vpack.c.bf16 %v229, %v228
  %v242 = vpack.c.bf16 %v231, %v230
  %v243 = vpack.c.bf16 %v233, %v232
  %v244 = vpack.c.bf16 %v235, %v234
  %v245 = vpack.c.bf16 %v237, %v236
  %v254 = vunpack.c.l.b16 %v238
  %v255 = vunpack.c.h.b16 %v238
  %v256 = vunpack.c.l.b16 %v239
  %v257 = vunpack.c.h.b16 %v239
  %v258 = vunpack.c.l.b16 %v240
  %v259 = vunpack.c.h.b16 %v240
  %v260 = vunpack.c.l.b16 %v241
  %v261 = vunpack.c.h.b16 %v241
  %v262 = vunpack.c.l.b16 %v242
  %v263 = vunpack.c.h.b16 %v242
  %v264 = vunpack.c.l.b16 %v243
  %v265 = vunpack.c.h.b16 %v243
  %v266 = vunpack.c.l.b16 %v244
  %v267 = vunpack.c.h.b16 %v244
  %v268 = vunpack.c.l.b16 %v245
  %v269 = vunpack.c.h.b16 %v245
  %v270 = vpack.c.b16 %v254, %v254
  %v271 = vpack.c.b16 %v255, %v255
  %v272 = vpack.c.b16 %v256, %v256
  %v273 = vpack.c.b16 %v257, %v257
  %v274 = vpack.c.b16 %v258, %v258
  %v275 = vpack.c.b16 %v259, %v259
  %v276 = vpack.c.b16 %v260, %v260
  %v277 = vpack.c.b16 %v261, %v261
  %v278 = vpack.c.b16 %v262, %v262
  %v279 = vpack.c.b16 %v263, %v263
  %v280 = vpack.c.b16 %v264, %v264
  %v281 = vpack.c.b16 %v265, %v265
  %v282 = vpack.c.b16 %v266, %v266
  %v283 = vpack.c.b16 %v267, %v267
  %v284 = vpack.c.b16 %v268, %v268
  %v285 = vpack.c.b16 %v269, %v269
  %vm302 = vcmask 60416
  %303 = vst.msk [vmem:[%s2] sm:$0xf] %vm302, %v270
  %304 = vst.msk [vmem:[%s2 + $0x4] sm:$0xf] %vm302, %v271
  %305 = vst.msk [vmem:[%s2 + $0x8] sm:$0xf] %vm302, %v272
  %306 = vst.msk [vmem:[%s2 + $0xc] sm:$0xf] %vm302, %v273
  %307 = vst.msk [vmem:[%s2 + $0x10] sm:$0xf] %vm302, %v274
  %308 = vst.msk [vmem:[%s2 + $0x14] sm:$0xf] %vm302, %v275
  %309 = vst.msk [vmem:[%s2 + $0x18] sm:$0xf] %vm302, %v276
  %310 = vst.msk [vmem:[%s2 + $0x1c] sm:$0xf] %vm302, %v277
  %311 = vst.msk [vmem:[%s2 + $0x20] sm:$0xf] %vm302, %v278
  %312 = vst.msk [vmem:[%s2 + $0x24] sm:$0xf] %vm302, %v279
  %313 = vst.msk [vmem:[%s2 + $0x28] sm:$0xf] %vm302, %v280
  %314 = vst.msk [vmem:[%s2 + $0x2c] sm:$0xf] %vm302, %v281
  %315 = vst.msk [vmem:[%s2 + $0x30] sm:$0xf] %vm302, %v282
  %316 = vst.msk [vmem:[%s2 + $0x34] sm:$0xf] %vm302, %v283
  %317 = vst.msk [vmem:[%s2 + $0x38] sm:$0xf] %vm302, %v284
  %318 = vst.msk [vmem:[%s2 + $0x3c] sm:$0xf] %vm302, %v285
  // Predicated region
  $region10: #{unet_innermost_forward.3} parent=0 // pred_check
    _
  $region11: #{unet_innermost_forward.3} parent=0 // pred_check_branch
    %320 = sbr.rel (0) target = $region13
  $region12: #{unet_innermost_forward.3} parent=0 // pred_region
    _
  $region13: #{unet_innermost_forward.3} parent=0 // pred_fallthru
    _
  // Predicated region
  $region14: #{unet_innermost_forward.3} parent=0 // pred_check
    _
  $region15: #{unet_innermost_forward.3} parent=0 // pred_check_branch
    %322 = sbr.rel (0) target = $region17
  $region16: #{unet_innermost_forward.3} parent=0 // pred_region
    _
  $region17: #{unet_innermost_forward.3} parent=0 // pred_fallthru
    _

// kernel: unet_innermost_forward.4
$region0: #{unet_innermost_forward.4}
  #allocation0 [shape = 'u32[]', space=smem, size = 0x4, offset = 0x4, fixed_abs, tag = 'smem constant byte address 0x4 - core index']
  #allocation1 [shape = 'u32[144,128]{1,0:T(1,128)}', space=vmem, size = 0x12000, scoped, tag = 'internal scratch']
  %s0 = inlined_call_operand.vmem [shape: bf16[2,2,2,64,32], index: 0, kind: input, shape index: {}]
  %s1 = inlined_call_operand.vmem [shape: bf16[2,2,32,4], index: 1, kind: input, shape index: {}]
  %s2 = inlined_call_operand.vmem [shape: bf16[2,2,2,64,4], index: 2, kind: output, shape index: {0}]
  %s3 = inlined_call_operand.vmem [shape: f32[2,2,1,1,4], index: 3, kind: output, shape index: {1}]
  %s4 = inlined_call_operand.vmem [shape: f32[2,2,1,1,4], index: 4, kind: output, shape index: {2}]
  %5 = xla_tuple %s2, %s3, %s4
  %s6 = sld [smem:[#allocation0]]
  $region61: #{unet_innermost_forward.4} parent=0
    _
  %s8 = ssub.s32 1, %s6
  %s9 = scalar_select 0, %s8, %s6
  loop: start=0, step=1, limit=6
  $region2: #{unet_innermost_forward.4} parent=0 // loop_pre_header
    _
  $region3: #{unet_innermost_forward.4} parent=0 // loop_header
    %s11 = sphi 0, %s15
    %p12 = scmp.ge.s32.totalorder %s11, 6
    %s18 = sphi 0, %s37
    %s19 = sphi 0, %s33
    %s20 = sphi 0, %s29
    %s21 = sphi 0, %s18
    %s22 = sphi 0, %s19
    %s23 = sphi 0, %s20
    %s24 = sphi 0, %s21
    %s25 = sphi 0, %s22
    %s26 = sphi 0, %s23
    %s44 = sphi 0, %s46
    %s47 = sphi 0, %s44
    %s48 = sphi 0, %s47
    %s64 = sphi 0, %s48
    %s72 = sphi 0, %s74
    %s75 = sphi 0, %s72
    %s76 = sphi 0, %s75
    %s92 = sphi 0, %s76
    %s102 = sphi 0, %s104
    %s105 = sphi 0, %s102
    %s106 = sphi 0, %s105
    %s122 = sphi 0, %s106
    %s130 = sphi 0, %s132
    %s133 = sphi 0, %s130
    %s134 = sphi 0, %s133
    %s150 = sphi 0, %s134
    %s158 = sphi 0, %s160
    %s161 = sphi 0, %s158
    %s162 = sphi 0, %s161
    %s178 = sphi 0, %s162
  $region4: #{unet_innermost_forward.4} parent=0 // loop_header_branch
    %14 = sbr.rel (%p12) target = $region8
  $region5: #{unet_innermost_forward.4} parent=0 // loop_body
    %s16 = ssub.s32 %s11, 1
    %s17 = ssub.s32 %s11, 2
    %s27 = sadd.s32 1, %s20
    %p28 = scmp.ge.s32.totalorder %s27, 1
    %s29 = scalar_select %p28, 0, %s27
    %s30 = sadd.s32 1, %s19
    %s31 = scalar_select %p28, %s30, %s19
    %p32 = scmp.ge.s32.totalorder %s31, 2
    %s33 = scalar_select %p32, 0, %s31
    %s34 = sadd.s32 1, %s18
    %s35 = scalar_select %p32, %s34, %s18
    %p36 = scmp.ge.s32.totalorder %s35, 2
    %s37 = scalar_select %p36, 0, %s35
    %s38 = ssub.s32 %s18, %s37
    %s39 = ssub.s32 %s19, %s33
    %s40 = sor.u32 %s38, %s39
    %s41 = ssub.s32 %s20, %s29
    %s42 = sor.u32 %s40, %s41
    %p43 = scmp.eq.s32.totalorder %s42, 0
    %s45 = sadd.s32 %s44, 1
    %s46 = scalar_select %p43, %s44, %s45
    %p49 = pneg %p43
    %p50 = scmp.eq.s32.totalorder %s11, 3
    %p51 = por %p49, %p50
    %p52 = scmp.ne.s32.totalorder %s44, %s47
    %p53 = scmp.eq.s32.totalorder %s11, 0
    %p54 = por %p52, %p53
    %p55 = scmp.ne.s32.totalorder %s44, %s47
    %p56 = scmp.eq.s32.totalorder %s16, 3
    %p57 = por %p55, %p56
    %p58 = scmp.ne.s32.totalorder %s47, %s48
    %p59 = scmp.eq.s32.totalorder %s16, 0
    %p60 = por %p58, %p59
    %p61 = scmp.ne.s32.totalorder %s47, %s48
    %p62 = scmp.eq.s32.totalorder %s17, 3
    %p63 = por %p61, %p62
    %p65 = scmp.ne.s32.totalorder %s48, %s64
    %p66 = scmp.eq.s32.totalorder %s17, 0
    %p67 = por %p65, %p66
    %s68 = ssub.s32 %s18, %s37
    %s69 = ssub.s32 %s19, %s33
    %s70 = sor.u32 %s68, %s69
    %p71 = scmp.eq.s32.totalorder %s70, 0
    %s73 = sadd.s32 %s72, 1
    %s74 = scalar_select %p71, %s72, %s73
    %p77 = pneg %p71
    %p78 = scmp.eq.s32.totalorder %s11, 3
    %p79 = por %p77, %p78
    %p80 = scmp.ne.s32.totalorder %s72, %s75
    %p81 = scmp.eq.s32.totalorder %s11, 0
    %p82 = por %p80, %p81
    %p83 = scmp.ne.s32.totalorder %s72, %s75
    %p84 = scmp.eq.s32.totalorder %s16, 3
    %p85 = por %p83, %p84
    %p86 = scmp.ne.s32.totalorder %s75, %s76
    %p87 = scmp.eq.s32.totalorder %s16, 0
    %p88 = por %p86, %p87
    %p89 = scmp.ne.s32.totalorder %s75, %s76
    %p90 = scmp.eq.s32.totalorder %s17, 3
    %p91 = por %p89, %p90
    %p93 = scmp.ne.s32.totalorder %s76, %s92
    %p94 = scmp.eq.s32.totalorder %s17, 0
    %p95 = por %p93, %p94
    %s96 = ssub.s32 %s18, %s37
    %s97 = ssub.s32 %s19, %s33
    %s98 = sor.u32 %s96, %s97
    %s99 = ssub.s32 %s20, %s29
    %s100 = sor.u32 %s98, %s99
    %p101 = scmp.eq.s32.totalorder %s100, 0
    %s103 = sadd.s32 %s102, 1
    %s104 = scalar_select %p101, %s102, %s103
    %p107 = pneg %p101
    %p108 = scmp.eq.s32.totalorder %s11, 3
    %p109 = por %p107, %p108
    %p110 = scmp.ne.s32.totalorder %s102, %s105
    %p111 = scmp.eq.s32.totalorder %s11, 0
    %p112 = por %p110, %p111
    %p113 = scmp.ne.s32.totalorder %s102, %s105
    %p114 = scmp.eq.s32.totalorder %s16, 3
    %p115 = por %p113, %p114
    %p116 = scmp.ne.s32.totalorder %s105, %s106
    %p117 = scmp.eq.s32.totalorder %s16, 0
    %p118 = por %p116, %p117
    %p119 = scmp.ne.s32.totalorder %s105, %s106
    %p120 = scmp.eq.s32.totalorder %s17, 3
    %p121 = por %p119, %p120
    %p123 = scmp.ne.s32.totalorder %s106, %s122
    %p124 = scmp.eq.s32.totalorder %s17, 0
    %p125 = por %p123, %p124
    %s126 = ssub.s32 %s18, %s37
    %s127 = ssub.s32 %s19, %s33
    %s128 = sor.u32 %s126, %s127
    %p129 = scmp.eq.s32.totalorder %s128, 0
    %s131 = sadd.s32 %s130, 1
    %s132 = scalar_select %p129, %s130, %s131
    %p135 = pneg %p129
    %p136 = scmp.eq.s32.totalorder %s11, 3
    %p137 = por %p135, %p136
    %p138 = scmp.ne.s32.totalorder %s130, %s133
    %p139 = scmp.eq.s32.totalorder %s11, 0
    %p140 = por %p138, %p139
    %p141 = scmp.ne.s32.totalorder %s130, %s133
    %p142 = scmp.eq.s32.totalorder %s16, 3
    %p143 = por %p141, %p142
    %p144 = scmp.ne.s32.totalorder %s133, %s134
    %p145 = scmp.eq.s32.totalorder %s16, 0
    %p146 = por %p144, %p145
    %p147 = scmp.ne.s32.totalorder %s133, %s134
    %p148 = scmp.eq.s32.totalorder %s17, 3
    %p149 = por %p147, %p148
    %p151 = scmp.ne.s32.totalorder %s134, %s150
    %p152 = scmp.eq.s32.totalorder %s17, 0
    %p153 = por %p151, %p152
    %s154 = ssub.s32 %s18, %s37
    %s155 = ssub.s32 %s19, %s33
    %s156 = sor.u32 %s154, %s155
    %p157 = scmp.eq.s32.totalorder %s156, 0
    %s159 = sadd.s32 %s158, 1
    %s160 = scalar_select %p157, %s158, %s159
    %p163 = pneg %p157
    %p164 = scmp.eq.s32.totalorder %s11, 3
    %p165 = por %p163, %p164
    %p166 = scmp.ne.s32.totalorder %s158, %s161
    %p167 = scmp.eq.s32.totalorder %s11, 0
    %p168 = por %p166, %p167
    %p169 = scmp.ne.s32.totalorder %s158, %s161
    %p170 = scmp.eq.s32.totalorder %s16, 3
    %p171 = por %p169, %p170
    %p172 = scmp.ne.s32.totalorder %s161, %s162
    %p173 = scmp.eq.s32.totalorder %s16, 0
    %p174 = por %p172, %p173
    %p175 = scmp.ne.s32.totalorder %s161, %s162
    %p176 = scmp.eq.s32.totalorder %s17, 3
    %p177 = por %p175, %p176
    %p179 = scmp.ne.s32.totalorder %s162, %s178
    %p180 = scmp.eq.s32.totalorder %s17, 0
    %p181 = por %p179, %p180
    %p182 = scmp.le.s32.totalorder 1, %s11
    %p183 = scmp.lt.s32.totalorder %s11, 5
    %p184 = pnand %p182, %p183
    %p185 = pneg %p184
    // Predicated region
    $region9: #{unet_innermost_forward.4} parent=5 // pred_check
      _
    $region10: #{unet_innermost_forward.4} parent=5 // pred_check_branch
      %187 = sbr.rel (%p184) target = $region12
    $region11: #{unet_innermost_forward.4} parent=5 // pred_region
      %s188 = ssub.s32 %s11, 1
    $region12: #{unet_innermost_forward.4} parent=5 // pred_fallthru
      _
    %p189 = scmp.lt.s32.totalorder %s11, 4
    // Predicated region
    $region13: #{unet_innermost_forward.4} parent=5 // pred_check
      %p190 = pneg %p189
    $region14: #{unet_innermost_forward.4} parent=5 // pred_check_branch
      %192 = sbr.rel (%p190) target = $region16
    $region15: #{unet_innermost_forward.4} parent=5 // pred_region
      // Predicated region
      $region17: #{unet_innermost_forward.4} parent=15 // pred_check
        %p193 = pneg %p54
      $region18: #{unet_innermost_forward.4} parent=15 // pred_check_branch
        %195 = sbr.rel (%p193) target = $region20
      $region19: #{unet_innermost_forward.4} parent=15 // pred_region
        %s196 = smul.u32 2, %s20
        %p197 = scmp.lt.s32.totalorder %s18, 1
        %s198 = scalar_select %p197, %s18, 1
        %p199 = scmp.lt.s32.totalorder %s19, 1
        %s200 = scalar_select %p199, %s19, 1
        %p201 = scmp.lt.s32.totalorder %s196, 1
        %s202 = scalar_select %p201, %s196, 1
        %s203 = smul.addr %s202, 8
        %s204 = smul.addr %s200, 16
        %s205 = sadd.s32 %s203, %s204
        %s206 = smul.addr %s198, 32
        %s207 = sadd.s32 %s205, %s206
        %s208 = smul.addr %s207, 4
        %s209 = scalar_lea.vmem %s0, %s208
        %s210 = smul.u32 2, %s20
      $region20: #{unet_innermost_forward.4} parent=15 // pred_fallthru
        _
      // Predicated region
      $region21: #{unet_innermost_forward.4} parent=15 // pred_check
        %p211 = pneg %p82
      $region22: #{unet_innermost_forward.4} parent=15 // pred_check_branch
        %213 = sbr.rel (%p211) target = $region24
      $region23: #{unet_innermost_forward.4} parent=15 // pred_region
        %p214 = scmp.lt.s32.totalorder %s18, 1
        %s215 = scalar_select %p214, %s18, 1
        %p216 = scmp.lt.s32.totalorder %s19, 1
        %s217 = scalar_select %p216, %s19, 1
        %s218 = smul.addr %s217, 4
        %s219 = smul.addr %s215, 8
        %s220 = sadd.s32 %s218, %s219
        %s221 = smul.addr %s220, 4
        %s222 = scalar_lea.vmem %s1, %s221
      $region24: #{unet_innermost_forward.4} parent=15 // pred_fallthru
        _
    $region16: #{unet_innermost_forward.4} parent=5 // pred_fallthru
      _
    %p223 = scmp.le.s32.totalorder 1, %s11
    %p224 = scmp.lt.s32.totalorder %s11, 5
    %p225 = pnand %p223, %p224
    %p226 = pneg %p225
    // Predicated region
    $region25: #{unet_innermost_forward.4} parent=5 // pred_check
      _
    $region26: #{unet_innermost_forward.4} parent=5 // pred_check_branch
      %228 = sbr.rel (%p225) target = $region28
    $region27: #{unet_innermost_forward.4} parent=5 // pred_region
      %s229 = ssub.s32 %s11, 1
      %s230 = smul.u32 2, %s23
      %p231 = scmp.lt.s32.totalorder %s21, 1
      %s232 = scalar_select %p231, %s21, 1
      %p233 = scmp.lt.s32.totalorder %s22, 1
      %s234 = scalar_select %p233, %s22, 1
      %p235 = scmp.lt.s32.totalorder %s230, 1
      %s236 = scalar_select %p235, %s230, 1
      %s237 = smul.addr %s236, 8
      %s238 = smul.addr %s234, 16
      %s239 = sadd.s32 %s237, %s238
      %s240 = smul.addr %s232, 32
      %s241 = sadd.s32 %s239, %s240
      %s242 = smul.addr %s241, 4
      %s243 = scalar_lea.vmem %s0, %s242
      %p244 = pneg %p60
      %p245 = pneg %p57
      %p246 = scmp.lt.s32.totalorder %s21, 1
      %s247 = scalar_select %p246, %s21, 1
      %p248 = scmp.lt.s32.totalorder %s22, 1
      %s249 = scalar_select %p248, %s22, 1
      %s250 = smul.addr %s249, 4
      %s251 = smul.addr %s247, 8
      %s252 = sadd.s32 %s250, %s251
      %s253 = smul.addr %s252, 4
      %s254 = scalar_lea.vmem %s1, %s253
      %p255 = pneg %p88
      %p256 = pneg %p85
      %p257 = pneg %p118
      %p258 = pneg %p115
      %s259 = smul.u32 2, %s23
      %p260 = scmp.lt.s32.totalorder %s21, 1
      %s261 = scalar_select %p260, %s21, 1
      %p262 = scmp.lt.s32.totalorder %s22, 1
      %s263 = scalar_select %p262, %s22, 1
      %p264 = scmp.lt.s32.totalorder %s259, 1
      %s265 = scalar_select %p264, %s259, 1
      %s266 = smul.addr %s265, 8
      %s267 = smul.addr %s263, 16
      %s268 = sadd.s32 %s266, %s267
      %s269 = smul.addr %s261, 32
      %s270 = sadd.s32 %s268, %s269
      %s271 = smul.addr %s270, 4
      %s272 = scalar_lea.vmem %s2, %s271
      %p273 = pneg %p146
      %p274 = pneg %p143
      %p275 = scmp.lt.s32.totalorder %s21, 1
      %s276 = scalar_select %p275, %s21, 1
      %p277 = scmp.lt.s32.totalorder %s22, 1
      %s278 = scalar_select %p277, %s22, 1
      %s279 = smul.addr %s276, 2
      %s280 = sadd.s32 %s278, %s279
      %s281 = scalar_lea.vmem %s3, %s280
      %p282 = pneg %p174
      %p283 = pneg %p171
      %p284 = scmp.lt.s32.totalorder %s21, 1
      %s285 = scalar_select %p284, %s21, 1
      %p286 = scmp.lt.s32.totalorder %s22, 1
      %s287 = scalar_select %p286, %s22, 1
      %s288 = smul.addr %s285, 2
      %s289 = sadd.s32 %s287, %s288
      %s290 = scalar_lea.vmem %s4, %s289
      %s291 = smul.u32 2, %s23
      %p292 = scmp.lt.s32.totalorder %s21, 1
      %s293 = scalar_select %p292, %s21, 1
      %p294 = scmp.lt.s32.totalorder %s22, 1
      %s295 = scalar_select %p294, %s22, 1
      %p296 = scmp.lt.s32.totalorder %s291, 1
      %s297 = scalar_select %p296, %s291, 1
      %s298 = smul.addr %s297, 8
      %s299 = smul.addr %s295, 16
      %s300 = sadd.s32 %s298, %s299
      %s301 = smul.addr %s293, 32
      %s302 = sadd.s32 %s300, %s301
      %s303 = smul.addr %s302, 4
      %s304 = scalar_lea.vmem %s0, %s303
      %s305 = smul.u32 2, %s23
      %p306 = scmp.lt.s32.totalorder %s21, 1
      %s307 = scalar_select %p306, %s21, 1
      %p308 = scmp.lt.s32.totalorder %s22, 1
      %s309 = scalar_select %p308, %s22, 1
      %s310 = smul.addr %s309, 4
      %s311 = smul.addr %s307, 8
      %s312 = sadd.s32 %s310, %s311
      %s313 = smul.addr %s312, 4
      %s314 = scalar_lea.vmem %s1, %s313
      %s315 = smul.u32 2, %s23
      %p316 = scmp.lt.s32.totalorder %s21, 1
      %s317 = scalar_select %p316, %s21, 1
      %p318 = scmp.lt.s32.totalorder %s22, 1
      %s319 = scalar_select %p318, %s22, 1
      %p320 = scmp.lt.s32.totalorder %s315, 1
      %s321 = scalar_select %p320, %s315, 1
      %s322 = smul.addr %s321, 8
      %s323 = smul.addr %s319, 16
      %s324 = sadd.s32 %s322, %s323
      %s325 = smul.addr %s317, 32
      %s326 = sadd.s32 %s324, %s325
      %s327 = smul.addr %s326, 4
      %s328 = scalar_lea.vmem %s2, %s327
      %s329 = smul.u32 2, %s23
      %p330 = scmp.lt.s32.totalorder %s21, 1
      %s331 = scalar_select %p330, %s21, 1
      %p332 = scmp.lt.s32.totalorder %s22, 1
      %s333 = scalar_select %p332, %s22, 1
      %s334 = smul.addr %s331, 2
      %s335 = sadd.s32 %s333, %s334
      %s336 = scalar_lea.vmem %s3, %s335
      %p337 = scmp.lt.s32.totalorder %s21, 1
      %s338 = scalar_select %p337, %s21, 1
      %p339 = scmp.lt.s32.totalorder %s22, 1
      %s340 = scalar_select %p339, %s22, 1
      %s341 = smul.addr %s338, 2
      %s342 = sadd.s32 %s340, %s341
      %s343 = scalar_lea.vmem %s4, %s342
      %v345 = vld [vmem:[%s304] sm:$0xf]
      %v346 = vld [vmem:[%s304 + $0x4] sm:$0xf]
      %v347 = vld [vmem:[%s304 + $0x8] sm:$0xf]
      %v348 = vld [vmem:[%s304 + $0xc] sm:$0xf]
      %v349 = vld [vmem:[%s304 + $0x10] sm:$0xf]
      %v350 = vld [vmem:[%s304 + $0x14] sm:$0xf]
      %v351 = vld [vmem:[%s304 + $0x18] sm:$0xf]
      %v352 = vld [vmem:[%s304 + $0x1c] sm:$0xf]
      %v353 = vld [vmem:[%s304 + $0x20] sm:$0xf]
      %v354 = vld [vmem:[%s304 + $0x24] sm:$0xf]
      %v355 = vld [vmem:[%s304 + $0x28] sm:$0xf]
      %v356 = vld [vmem:[%s304 + $0x2c] sm:$0xf]
      %v357 = vld [vmem:[%s304 + $0x30] sm:$0xf]
      %v358 = vld [vmem:[%s304 + $0x34] sm:$0xf]
      %v359 = vld [vmem:[%s304 + $0x38] sm:$0xf]
      %v360 = vld [vmem:[%s304 + $0x3c] sm:$0xf]
      %v361 = vld [vmem:[%s314] sm:$0xf]
      %v362 = vld [vmem:[%s314 + $0x4] sm:$0xf]
      %v363 = vld [vmem:[%s314 + $0x8] sm:$0xf]
      %v364 = vld [vmem:[%s314 + $0xc] sm:$0xf]
      %v381 = vunpack.c.l.b16 %v345
      %v382 = vunpack.c.l.b16 %v346
      %v383 = vunpack.c.l.b16 %v347
      %v384 = vunpack.c.l.b16 %v348
      %v385 = vunpack.c.l.b16 %v349
      %v386 = vunpack.c.l.b16 %v350
      %v387 = vunpack.c.l.b16 %v351
      %v388 = vunpack.c.l.b16 %v352
      %v389 = vunpack.c.l.b16 %v353
      %v390 = vunpack.c.l.b16 %v354
      %v391 = vunpack.c.l.b16 %v355
      %v392 = vunpack.c.l.b16 %v356
      %v393 = vunpack.c.l.b16 %v357
      %v394 = vunpack.c.l.b16 %v358
      %v395 = vunpack.c.l.b16 %v359
      %v396 = vunpack.c.l.b16 %v360
      %v397 = vpack.c.b16 %v382, %v381
      %v398 = vpack.c.b16 %v384, %v383
      %v399 = vpack.c.b16 %v386, %v385
      %v400 = vpack.c.b16 %v388, %v387
      %v401 = vpack.c.b16 %v390, %v389
      %v402 = vpack.c.b16 %v392, %v391
      %v403 = vpack.c.b16 %v394, %v393
      %v404 = vpack.c.b16 %v396, %v395
      %v409 = vunpack.c.l.b16 %v361
      %v410 = vunpack.c.l.b16 %v362
      %v411 = vunpack.c.l.b16 %v363
      %v412 = vunpack.c.l.b16 %v364
      %v413 = vpack.c.b16 %v410, %v409
      %v414 = vpack.c.b16 %v412, %v411
      %vm417 = vcmask 261120
      %v419 = vsel %vm417, %v397, 0
      %v422 = vsel %vm417, %v398, 0
      %v425 = vsel %vm417, %v399, 0
      %v428 = vsel %vm417, %v400, 0
      %v431 = vsel %vm417, %v401, 0
      %v434 = vsel %vm417, %v402, 0
      %v437 = vsel %vm417, %v403, 0
      %v440 = vsel %vm417, %v404, 0
      %442 = vmatprep.subr.bf16.mxu0 0
      %443 = vmatpush1.bf16.msra.mxu0 0
      %444 = vmatprep.subr.bf16.mxu0 0
      %445 = vmatpush1.bf16.msra.mxu0 0
      %446 = vmatprep.subr.bf16.mxu0 0
      %447 = vmatpush1.bf16.msra.mxu0 0
      %448 = vmatprep.subr.bf16.mxu0 0
      %449 = vmatpush1.bf16.msra.mxu0 0
      %450 = vmatprep.subr.bf16.mxu0 0
      %451 = vmatpush1.bf16.msra.mxu0 0
      %452 = vmatprep.subr.bf16.mxu0 0
      %453 = vmatpush1.bf16.msra.mxu0 0
      %454 = vmatprep.subr.bf16.mxu0 0
      %455 = vmatpush1.bf16.msra.mxu0 %v414
      %456 = vmatprep.subr.bf16.mxu0 0
      %457 = vmatpush1.bf16.msra.mxu0 %v413
      %458 = vmatprep.subr.bf16.mxu0 0
      %459 = vmatpush2.bf16.msra.mxu0 0
      %460 = vmatprep.subr.bf16.mxu0 0
      %461 = vmatpush2.bf16.msra.mxu0 0
      %462 = vmatprep.subr.bf16.mxu0 0
      %463 = vmatpush2.bf16.msra.mxu0 0
      %464 = vmatprep.subr.bf16.mxu0 0
      %465 = vmatpush2.bf16.msra.mxu0 0
      %466 = vmatprep.subr.bf16.mxu0 0
      %467 = vmatpush2.bf16.msra.mxu0 0
      %468 = vmatprep.subr.bf16.mxu0 0
      %469 = vmatpush2.bf16.msra.mxu0 0
      %470 = vmatprep.subr.bf16.mxu0 0
      %471 = vmatpush2.bf16.msra.mxu0 0
      %472 = vmatprep.subr.bf16.mxu0 0
      %473 = vmatpush2.bf16.msra.mxu0 0
      %474 = vmatprep.mubr.bf16.mxu0 0
      %475 = vmatmul.mubr.bf16.gmra.mxu0 %v419
      %v476 = vpop.f32.mrf.mxu0
      %v477 = vadd.f32 0.0, %v476
      %v478 = vpop.f32.mrf.mxu0
      %v479 = vpop.f32.mrf.mxu0
      %v480 = vadd.f32 0.0, %v479
      %v481 = vpop.f32.mrf.mxu0
      %482 = vmatprep.mubr.bf16.mxu0 0
      %483 = vmatmul.mubr.bf16.gmra.mxu0 %v422
      %v484 = vpop.f32.mrf.mxu0
      %v485 = vadd.f32 0.0, %v484
      %v486 = vpop.f32.mrf.mxu0
      %v487 = vpop.f32.mrf.mxu0
      %v488 = vadd.f32 0.0, %v487
      %v489 = vpop.f32.mrf.mxu0
      %490 = vmatprep.mubr.bf16.mxu0 0
      %491 = vmatmul.mubr.bf16.gmra.mxu0 %v425
      %v492 = vpop.f32.mrf.mxu0
      %v493 = vadd.f32 0.0, %v492
      %v494 = vpop.f32.mrf.mxu0
      %v495 = vpop.f32.mrf.mxu0
      %v496 = vadd.f32 0.0, %v495
      %v497 = vpop.f32.mrf.mxu0
      %498 = vmatprep.mubr.bf16.mxu0 0
      %499 = vmatmul.mubr.bf16.gmra.mxu0 %v428
      %v500 = vpop.f32.mrf.mxu0
      %v501 = vadd.f32 0.0, %v500
      %v502 = vpop.f32.mrf.mxu0
      %v503 = vpop.f32.mrf.mxu0
      %v504 = vadd.f32 0.0, %v503
      %v505 = vpop.f32.mrf.mxu0
      %506 = vmatprep.mubr.bf16.mxu0 0
      %507 = vmatmul.mubr.bf16.gmra.mxu0 %v431
      %v508 = vpop.f32.mrf.mxu0
      %v509 = vadd.f32 0.0, %v508
      %v510 = vpop.f32.mrf.mxu0
      %v511 = vpop.f32.mrf.mxu0
      %v512 = vadd.f32 0.0, %v511
      %v513 = vpop.f32.mrf.mxu0
      %514 = vmatprep.mubr.bf16.mxu0 0
      %515 = vmatmul.mubr.bf16.gmra.mxu0 %v434
      %v516 = vpop.f32.mrf.mxu0
      %v517 = vadd.f32 0.0, %v516
      %v518 = vpop.f32.mrf.mxu0
      %v519 = vpop.f32.mrf.mxu0
      %v520 = vadd.f32 0.0, %v519
      %v521 = vpop.f32.mrf.mxu0
      %522 = vmatprep.mubr.bf16.mxu0 0
      %523 = vmatmul.mubr.bf16.gmra.mxu0 %v437
      %v524 = vpop.f32.mrf.mxu0
      %v525 = vadd.f32 0.0, %v524
      %v526 = vpop.f32.mrf.mxu0
      %v527 = vpop.f32.mrf.mxu0
      %v528 = vadd.f32 0.0, %v527
      %v529 = vpop.f32.mrf.mxu0
      %530 = vmatprep.mubr.bf16.mxu0 0
      %531 = vmatmul.mubr.bf16.gmra.mxu0 %v440
      %v532 = vpop.f32.mrf.mxu0
      %v533 = vadd.f32 0.0, %v532
      %v534 = vpop.f32.mrf.mxu0
      %v535 = vpop.f32.mrf.mxu0
      %v536 = vadd.f32 0.0, %v535
      %v537 = vpop.f32.mrf.mxu0
      %538 = vdwg.mxu0
      %v539 = vpack.c.bf16 %v480, %v477
      %v540 = vpack.c.bf16 %v488, %v485
      %v541 = vpack.c.bf16 %v496, %v493
      %v542 = vpack.c.bf16 %v504, %v501
      %v543 = vpack.c.bf16 %v512, %v509
      %v544 = vpack.c.bf16 %v520, %v517
      %v545 = vpack.c.bf16 %v528, %v525
      %v546 = vpack.c.bf16 %v536, %v533
      %v555 = vunpack.c.l.b16 %v539
      %v556 = vunpack.c.h.b16 %v539
      %v557 = vunpack.c.l.b16 %v540
      %v558 = vunpack.c.h.b16 %v540
      %v559 = vunpack.c.l.b16 %v541
      %v560 = vunpack.c.h.b16 %v541
      %v561 = vunpack.c.l.b16 %v542
      %v562 = vunpack.c.h.b16 %v542
      %v563 = vunpack.c.l.b16 %v543
      %v564 = vunpack.c.h.b16 %v543
      %v565 = vunpack.c.l.b16 %v544
      %v566 = vunpack.c.h.b16 %v544
      %v567 = vunpack.c.l.b16 %v545
      %v568 = vunpack.c.h.b16 %v545
      %v569 = vunpack.c.l.b16 %v546
      %v570 = vunpack.c.h.b16 %v546
      %v571 = vpack.c.b16 %v555, %v555
      %v572 = vpack.c.b16 %v556, %v556
      %v573 = vpack.c.b16 %v557, %v557
      %v574 = vpack.c.b16 %v558, %v558
      %v575 = vpack.c.b16 %v559, %v559
      %v576 = vpack.c.b16 %v560, %v560
      %v577 = vpack.c.b16 %v561, %v561
      %v578 = vpack.c.b16 %v562, %v562
      %v579 = vpack.c.b16 %v563, %v563
      %v580 = vpack.c.b16 %v564, %v564
      %v581 = vpack.c.b16 %v565, %v565
      %v582 = vpack.c.b16 %v566, %v566
      %v583 = vpack.c.b16 %v567, %v567
      %v584 = vpack.c.b16 %v568, %v568
      %v585 = vpack.c.b16 %v569, %v569
      %v586 = vpack.c.b16 %v570, %v570
      %vm603 = vcmask 27648
      %604 = vst.msk [vmem:[%s328] sm:$0xf] %vm603, %v571
      %605 = vst.msk [vmem:[%s328 + $0x4] sm:$0xf] %vm603, %v572
      %606 = vst.msk [vmem:[%s328 + $0x8] sm:$0xf] %vm603, %v573
      %607 = vst.msk [vmem:[%s328 + $0xc] sm:$0xf] %vm603, %v574
      %608 = vst.msk [vmem:[%s328 + $0x10] sm:$0xf] %vm603, %v575
      %609 = vst.msk [vmem:[%s328 + $0x14] sm:$0xf] %vm603, %v576
      %610 = vst.msk [vmem:[%s328 + $0x18] sm:$0xf] %vm603, %v577
      %611 = vst.msk [vmem:[%s328 + $0x1c] sm:$0xf] %vm603, %v578
      %612 = vst.msk [vmem:[%s328 + $0x20] sm:$0xf] %vm603, %v579
      %613 = vst.msk [vmem:[%s328 + $0x24] sm:$0xf] %vm603, %v580
      %614 = vst.msk [vmem:[%s328 + $0x28] sm:$0xf] %vm603, %v581
      %615 = vst.msk [vmem:[%s328 + $0x2c] sm:$0xf] %vm603, %v582
      %616 = vst.msk [vmem:[%s328 + $0x30] sm:$0xf] %vm603, %v583
      %617 = vst.msk [vmem:[%s328 + $0x34] sm:$0xf] %vm603, %v584
      %618 = vst.msk [vmem:[%s328 + $0x38] sm:$0xf] %vm603, %v585
      %619 = vst.msk [vmem:[%s328 + $0x3c] sm:$0xf] %vm603, %v586
      %p620 = scmp.eq.s32.totalorder %s23, 0
      // Predicated region
      $region29: #{unet_innermost_forward.4} parent=27 // pred_check
        %p621 = pneg %p620
      $region30: #{unet_innermost_forward.4} parent=27 // pred_check_branch
        %623 = sbr.rel (%p621) target = $region32
      $region31: #{unet_innermost_forward.4} parent=27 // pred_region
        %vm624 = vcmask 24576
        %625 = vst.msk [vmem:[%s336] sm:$0x1] %vm624, 0.0
        %626 = vst.msk [vmem:[%s343] sm:$0x1] %vm624, 0.0
      $region32: #{unet_innermost_forward.4} parent=27 // pred_fallthru
        _
      %v627 = vld [vmem:[%s336] sm:$0x1]
      %vm628 = vcmask 31744
      %v629 = vsel %vm628, %v477, 0.0
      %v630 = vsel %vm628, %v480, 0.0
      %v631 = vadd.f32 %v629, %v630
      %v632 = vsel %vm628, %v485, 0.0
      %v633 = vadd.f32 %v631, %v632
      %v634 = vsel %vm628, %v488, 0.0
      %v635 = vadd.f32 %v633, %v634
      %v636 = vsel %vm628, %v493, 0.0
      %v637 = vadd.f32 %v635, %v636
      %v638 = vsel %vm628, %v496, 0.0
      %v639 = vadd.f32 %v637, %v638
      %v640 = vsel %vm628, %v501, 0.0
      %v641 = vadd.f32 %v639, %v640
      %v642 = vsel %vm628, %v504, 0.0
      %v643 = vadd.f32 %v641, %v642
      %v644 = vsel %vm628, %v509, 0.0
      %v645 = vadd.f32 %v643, %v644
      %v646 = vsel %vm628, %v512, 0.0
      %v647 = vadd.f32 %v645, %v646
      %v648 = vsel %vm628, %v517, 0.0
      %v649 = vadd.f32 %v647, %v648
      %v650 = vsel %vm628, %v520, 0.0
      %v651 = vadd.f32 %v649, %v650
      %v652 = vsel %vm628, %v525, 0.0
      %v653 = vadd.f32 %v651, %v652
      %v654 = vsel %vm628, %v528, 0.0
      %v655 = vadd.f32 %v653, %v654
      %v656 = vsel %vm628, %v533, 0.0
      %v657 = vadd.f32 %v655, %v656
      %v658 = vsel %vm628, %v536, 0.0
      %v659 = vadd.f32 %v657, %v658
      %v660 = vrot.slane %v659, 4
      %v661 = vadd.f32 %v659, %v660
      %v662 = vrot.slane %v661, 2
      %v663 = vadd.f32 %v661, %v662
      %v664 = vrot.slane %v663, 1
      %v665 = vadd.f32 %v663, %v664
      %v666 = vadd.f32 %v627, %v665
      %vm667 = vcmask 24576
      %668 = vst.msk [vmem:[%s336] sm:$0x1] %vm667, %v666
      %v669 = vld [vmem:[%s343] sm:$0x1]
      %v670 = vmul.f32 %v477, %v477
      %v671 = vmul.f32 %v480, %v480
      %v672 = vmul.f32 %v485, %v485
      %v673 = vmul.f32 %v488, %v488
      %v674 = vmul.f32 %v493, %v493
      %v675 = vmul.f32 %v496, %v496
      %v676 = vmul.f32 %v501, %v501
      %v677 = vmul.f32 %v504, %v504
      %v678 = vmul.f32 %v509, %v509
      %v679 = vmul.f32 %v512, %v512
      %v680 = vmul.f32 %v517, %v517
      %v681 = vmul.f32 %v520, %v520
      %v682 = vmul.f32 %v525, %v525
      %v683 = vmul.f32 %v528, %v528
      %v684 = vmul.f32 %v533, %v533
      %v685 = vmul.f32 %v536, %v536
      %v686 = vsel %vm628, %v670, 0.0
      %v687 = vsel %vm628, %v671, 0.0
      %v688 = vadd.f32 %v686, %v687
      %v689 = vsel %vm628, %v672, 0.0
      %v690 = vadd.f32 %v688, %v689
      %v691 = vsel %vm628, %v673, 0.0
      %v692 = vadd.f32 %v690, %v691
      %v693 = vsel %vm628, %v674, 0.0
      %v694 = vadd.f32 %v692, %v693
      %v695 = vsel %vm628, %v675, 0.0
      %v696 = vadd.f32 %v694, %v695
      %v697 = vsel %vm628, %v676, 0.0
      %v698 = vadd.f32 %v696, %v697
      %v699 = vsel %vm628, %v677, 0.0
      %v700 = vadd.f32 %v698, %v699
      %v701 = vsel %vm628, %v678, 0.0
      %v702 = vadd.f32 %v700, %v701
      %v703 = vsel %vm628, %v679, 0.0
      %v704 = vadd.f32 %v702, %v703
      %v705 = vsel %vm628, %v680, 0.0
      %v706 = vadd.f32 %v704, %v705
      %v707 = vsel %vm628, %v681, 0.0
      %v708 = vadd.f32 %v706, %v707
      %v709 = vsel %vm628, %v682, 0.0
      %v710 = vadd.f32 %v708, %v709
      %v711 = vsel %vm628, %v683, 0.0
      %v712 = vadd.f32 %v710, %v711
      %v713 = vsel %vm628, %v684, 0.0
      %v714 = vadd.f32 %v712, %v713
      %v715 = vsel %vm628, %v685, 0.0
      %v716 = vadd.f32 %v714, %v715
      %v717 = vrot.slane %v716, 4
      %v718 = vadd.f32 %v716, %v717
      %v719 = vrot.slane %v718, 2
      %v720 = vadd.f32 %v718, %v719
      %v721 = vrot.slane %v720, 1
      %v722 = vadd.f32 %v720, %v721
      %v723 = vadd.f32 %v669, %v722
      %724 = vst.msk [vmem:[%s343] sm:$0x1] %vm667, %v723
      %s725 = smul.u32 2, %s23
      %p726 = scmp.lt.s32.totalorder %s21, 1
      %s727 = scalar_select %p726, %s21, 1
      %p728 = scmp.lt.s32.totalorder %s22, 1
      %s729 = scalar_select %p728, %s22, 1
      %p730 = scmp.lt.s32.totalorder %s725, 1
      %s731 = scalar_select %p730, %s725, 1
      %s732 = smul.addr %s731, 8
      %s733 = smul.addr %s729, 16
      %s734 = sadd.s32 %s732, %s733
      %s735 = smul.addr %s727, 32
      %s736 = sadd.s32 %s734, %s735
      %s737 = smul.addr %s736, 4
      %s738 = scalar_lea.vmem %s2, %s737
      %p739 = scmp.lt.s32.totalorder %s21, 1
      %s740 = scalar_select %p739, %s21, 1
      %p741 = scmp.lt.s32.totalorder %s22, 1
      %s742 = scalar_select %p741, %s22, 1
      %s743 = smul.addr %s740, 2
      %s744 = sadd.s32 %s742, %s743
      %s745 = scalar_lea.vmem %s3, %s744
      %p746 = scmp.lt.s32.totalorder %s21, 1
      %s747 = scalar_select %p746, %s21, 1
      %p748 = scmp.lt.s32.totalorder %s22, 1
      %s749 = scalar_select %p748, %s22, 1
      %s750 = smul.addr %s747, 2
      %s751 = sadd.s32 %s749, %s750
      %s752 = scalar_lea.vmem %s4, %s751
      // Predicated region
      $region33: #{unet_innermost_forward.4} parent=27 // pred_check
        %p753 = pneg %p115
      $region34: #{unet_innermost_forward.4} parent=27 // pred_check_branch
        %755 = sbr.rel (%p753) target = $region36
      $region35: #{unet_innermost_forward.4} parent=27 // pred_region
        %s756 = smul.u32 2, %s23
      $region36: #{unet_innermost_forward.4} parent=27 // pred_fallthru
        _
      // Predicated region
      $region37: #{unet_innermost_forward.4} parent=27 // pred_check
        %p757 = pneg %p143
      $region38: #{unet_innermost_forward.4} parent=27 // pred_check_branch
        %759 = sbr.rel (%p757) target = $region40
      $region39: #{unet_innermost_forward.4} parent=27 // pred_region
        _
      $region40: #{unet_innermost_forward.4} parent=27 // pred_fallthru
        _
      // Predicated region
      $region41: #{unet_innermost_forward.4} parent=27 // pred_check
        %p760 = pneg %p171
      $region42: #{unet_innermost_forward.4} parent=27 // pred_check_branch
        %762 = sbr.rel (%p760) target = $region44
      $region43: #{unet_innermost_forward.4} parent=27 // pred_region
        _
      $region44: #{unet_innermost_forward.4} parent=27 // pred_fallthru
        _
    $region28: #{unet_innermost_forward.4} parent=5 // pred_fallthru
      _
    %p763 = scmp.le.s32.totalorder 2, %s11
    // Predicated region
    $region45: #{unet_innermost_forward.4} parent=5 // pred_check
      %p764 = pneg %p763
    $region46: #{unet_innermost_forward.4} parent=5 // pred_check_branch
      %766 = sbr.rel (%p764) target = $region48
    $region47: #{unet_innermost_forward.4} parent=5 // pred_region
      %s767 = ssub.s32 %s11, 2
      // Predicated region
      $region49: #{unet_innermost_forward.4} parent=47 // pred_check
        %p768 = pneg %p121
      $region50: #{unet_innermost_forward.4} parent=47 // pred_check_branch
        %770 = sbr.rel (%p768) target = $region52
      $region51: #{unet_innermost_forward.4} parent=47 // pred_region
        %s771 = smul.u32 2, %s26
        %p772 = scmp.lt.s32.totalorder %s24, 1
        %s773 = scalar_select %p772, %s24, 1
        %p774 = scmp.lt.s32.totalorder %s25, 1
        %s775 = scalar_select %p774, %s25, 1
        %p776 = scmp.lt.s32.totalorder %s771, 1
        %s777 = scalar_select %p776, %s771, 1
        %s778 = smul.addr %s777, 8
        %s779 = smul.addr %s775, 16
        %s780 = sadd.s32 %s778, %s779
        %s781 = smul.addr %s773, 32
        %s782 = sadd.s32 %s780, %s781
        %s783 = smul.addr %s782, 4
        %s784 = scalar_lea.vmem %s2, %s783
      $region52: #{unet_innermost_forward.4} parent=47 // pred_fallthru
        _
      // Predicated region
      $region53: #{unet_innermost_forward.4} parent=47 // pred_check
        %p785 = pneg %p149
      $region54: #{unet_innermost_forward.4} parent=47 // pred_check_branch
        %787 = sbr.rel (%p785) target = $region56
      $region55: #{unet_innermost_forward.4} parent=47 // pred_region
        %p788 = scmp.lt.s32.totalorder %s24, 1
        %s789 = scalar_select %p788, %s24, 1
        %p790 = scmp.lt.s32.totalorder %s25, 1
        %s791 = scalar_select %p790, %s25, 1
        %s792 = smul.addr %s789, 2
        %s793 = sadd.s32 %s791, %s792
        %s794 = scalar_lea.vmem %s3, %s793
      $region56: #{unet_innermost_forward.4} parent=47 // pred_fallthru
        _
      // Predicated region
      $region57: #{unet_innermost_forward.4} parent=47 // pred_check
        %p795 = pneg %p177
      $region58: #{unet_innermost_forward.4} parent=47 // pred_check_branch
        %797 = sbr.rel (%p795) target = $region60
      $region59: #{unet_innermost_forward.4} parent=47 // pred_region
        %p798 = scmp.lt.s32.totalorder %s24, 1
        %s799 = scalar_select %p798, %s24, 1
        %p800 = scmp.lt.s32.totalorder %s25, 1
        %s801 = scalar_select %p800, %s25, 1
        %s802 = smul.addr %s799, 2
        %s803 = sadd.s32 %s801, %s802
        %s804 = scalar_lea.vmem %s4, %s803
      $region60: #{unet_innermost_forward.4} parent=47 // pred_fallthru
        _
    $region48: #{unet_innermost_forward.4} parent=5 // pred_fallthru
      _
  $region6: #{unet_innermost_forward.4} parent=0 // loop_footer
    %s15 = sadd.s32 1, %s11
  $region7: #{unet_innermost_forward.4} parent=0 // loop_footer_branch
    %10 = sbr.rel target = $region3
  $region8: #{unet_innermost_forward.4} parent=0 // loop_exit
    _

// kernel: unet_innermost_forward.5
$region0: #{unet_innermost_forward.5}
  #allocation0 [shape = 'u32[]', space=smem, size = 0x4, offset = 0x4, fixed_abs, tag = 'smem constant byte address 0x4 - core index']
  #allocation1 [shape = 'u32[144,128]{1,0:T(1,128)}', space=vmem, size = 0x12000, scoped, tag = 'internal scratch']
  %s0 = inlined_call_operand.vmem [shape: f32[2,4,256], index: 0, kind: input, shape index: {}]
  %s1 = inlined_call_operand.vmem [shape: bf16[2,4,256], index: 1, kind: input, shape index: {}]
  %s2 = inlined_call_operand.vmem [shape: f32[4,1], index: 2, kind: input, shape index: {}]
  %s3 = inlined_call_operand.vmem [shape: f32[4,1], index: 3, kind: input, shape index: {}]
  %s4 = inlined_call_operand.vmem [shape: f32[2,8,256], index: 4, kind: output, shape index: {}]
  %s5 = sld [smem:[#allocation0]]
  $region26: #{unet_innermost_forward.5} parent=0
    _
  %s7 = ssub.s32 1, %s5
  %s8 = scalar_select 0, %s7, %s5
  // Predicated region
  $region2: #{unet_innermost_forward.5} parent=0 // pred_check
    _
  $region3: #{unet_innermost_forward.5} parent=0 // pred_check_branch
    %10 = sbr.rel (0) target = $region5
  $region4: #{unet_innermost_forward.5} parent=0 // pred_region
    _
  $region5: #{unet_innermost_forward.5} parent=0 // pred_fallthru
    _
  // Predicated region
  $region6: #{unet_innermost_forward.5} parent=0 // pred_check
    _
  $region7: #{unet_innermost_forward.5} parent=0 // pred_check_branch
    %12 = sbr.rel (0) target = $region9
  $region8: #{unet_innermost_forward.5} parent=0 // pred_region
    _
  $region9: #{unet_innermost_forward.5} parent=0 // pred_fallthru
    _
  // Predicated region
  $region10: #{unet_innermost_forward.5} parent=0 // pred_check
    _
  $region11: #{unet_innermost_forward.5} parent=0 // pred_check_branch
    %14 = sbr.rel (0) target = $region13
  $region12: #{unet_innermost_forward.5} parent=0 // pred_region
    _
  $region13: #{unet_innermost_forward.5} parent=0 // pred_fallthru
    _
  // Predicated region
  $region14: #{unet_innermost_forward.5} parent=0 // pred_check
    _
  $region15: #{unet_innermost_forward.5} parent=0 // pred_check_branch
    %16 = sbr.rel (0) target = $region17
  $region16: #{unet_innermost_forward.5} parent=0 // pred_region
    _
  $region17: #{unet_innermost_forward.5} parent=0 // pred_fallthru
    _
  %v17 = vld [vmem:[%s0] sm:$0xff]
  %v18 = vld [vmem:[%s0 + $0x8] sm:$0xff]
  %v21 = vcombine.high %v17, %v17
  %v22 = vcombine.high %v18, %v18
  %25 = vst [vmem:[%s4] sm:$0xf] %v17
  %26 = vst [vmem:[%s4 + $0x8] sm:$0xf] %v21
  %27 = vst [vmem:[%s4 + $0x10] sm:$0xf] %v18
  %28 = vst [vmem:[%s4 + $0x18] sm:$0xf] %v22
  %v29 = vld [vmem:[%s1] sm:$0xf]
  %v30 = vld [vmem:[%s1 + $0x4] sm:$0xf]
  %v31 = vunpack.c.l.bf16 %v29
  %v32 = vunpack.c.l.bf16 %v30
  %v33 = vld [vmem:[%s2] sm:$0xf]
  %35 = vset.pattern.permute.xlu0 0
  %36 = vperm.xlu0 %35, %v33
  %v37 = vpop.permute.xlu0 %36
  %v39 = vunpack.c.l.s4 839922192
  %v40 = vunpack.c.0.s8 %v39
  %v41 = vlaneseq
  %v42 = vshrl.u32 %v41, 7
  %v43 = vsub.s32 %v40, %v42
  %v44 = vrot.slane %v37, %v43
  %v46 = vmul.f32 %v31, %v44
  %v47 = vmul.f32 %v32, %v44
  %v48 = vld [vmem:[%s3] sm:$0xf]
  %50 = vset.pattern.permute.xlu0 0
  %51 = vperm.xlu0 %50, %v48
  %v52 = vpop.permute.xlu0 %51
  %v54 = vunpack.c.l.s4 839922192
  %v55 = vunpack.c.0.s8 %v54
  %v56 = vlaneseq
  %v57 = vshrl.u32 %v56, 7
  %v58 = vsub.s32 %v55, %v57
  %v59 = vrot.slane %v52, %v58
  %v61 = vadd.f32 %v46, %v59
  %v62 = vadd.f32 %v47, %v59
  %v65 = vcombine.low %v61, %v61
  %v66 = vcombine.low %v62, %v62
  %69 = vst [vmem:[%s4] sm:$0xf0] %v65
  %70 = vst [vmem:[%s4 + $0x8] sm:$0xf0] %v61
  %71 = vst [vmem:[%s4 + $0x10] sm:$0xf0] %v66
  %72 = vst [vmem:[%s4 + $0x18] sm:$0xf0] %v62
  // Predicated region
  $region18: #{unet_innermost_forward.5} parent=0 // pred_check
    _
  $region19: #{unet_innermost_forward.5} parent=0 // pred_check_branch
    %74 = sbr.rel (0) target = $region21
  $region20: #{unet_innermost_forward.5} parent=0 // pred_region
    _
  $region21: #{unet_innermost_forward.5} parent=0 // pred_fallthru
    _
  // Predicated region
  $region22: #{unet_innermost_forward.5} parent=0 // pred_check
    _
  $region23: #{unet_innermost_forward.5} parent=0 // pred_check_branch
    %76 = sbr.rel (0) target = $region25
  $region24: #{unet_innermost_forward.5} parent=0 // pred_region
    _
  $region25: #{unet_innermost_forward.5} parent=0 // pred_fallthru
    _

</llo_original>
